<compile_context>
chip_gen: v7x
topology: tpu7x:2x2x1
jax: 0.10.0
libtpu: 0.0.40
codegen_flags: <defaults>
</compile_context>

<pallas_src>
import functools
import math

import jax
import jax.numpy as jnp
from jax import lax
from jax.experimental import pallas as pl
from jax.experimental.pallas import tpu as pltpu

BN_EPS = 1e-5


def _round_up(x, m):
    return (x + m - 1) // m * m


def _stage_conv(x_ref, img, w_ref, tap_ref, *, cin, wp, q_pad):
    """Stage the 9 lane-shifted 3x3 taps of image `img` into the bf16 scratch
    (sublane-stacked) and run one (Cout, 9*Cin) @ (9*Cin, Q) MXU matmul (f32 acc)."""
    for kh in range(3):
        for kw in range(3):
            t = kh * 3 + kw
            off = kh * wp + kw
            tap_ref[t * cin:(t + 1) * cin, :] = x_ref[img, :, off:off + q_pad]
    return jnp.dot(w_ref[...], tap_ref[...], preferred_element_type=jnp.float32)


# ---------------------------------------------------------------------------
# Pass 1: conv (recomputable, never stored) + per-block BN sum / sum-of-squares
# ---------------------------------------------------------------------------
def _conv_stats_kernel(x_ref, w_ref, m_ref, sum_ref, sq_ref, tap_ref,
                       *, nb, cin, wp, q_pad):
    cout = w_ref.shape[0]
    s = jnp.zeros((cout, 1), jnp.float32)
    ss = jnp.zeros((cout, 1), jnp.float32)
    m = m_ref[...]                                         # (1, Q) valid-column mask, f32
    for img in range(nb):
        y = _stage_conv(x_ref, img, w_ref, tap_ref, cin=cin, wp=wp, q_pad=q_pad)
        ym = y * m                                         # drop pad / tail columns
        s = s + jnp.sum(ym, axis=1, keepdims=True)         # single-pass sum
        ss = ss + jnp.sum(ym * y, axis=1, keepdims=True)   # single-pass sum of squares
    sum_ref[...] = s
    sq_ref[...] = ss


# ---------------------------------------------------------------------------
# Pass 2: recompute conv, fold batch stats into BN affine, ReLU, 2x2 max-pool
# ---------------------------------------------------------------------------
def _bn_relu_pool_kernel(x_ref, w_ref, sum_ref, sq_ref, g_ref, b_ref, sel_ref, o_ref,
                         tap_ref, zbuf_ref, *, nb, cin, wp, q_pad, hw_pool, count):
    cout = w_ref.shape[0]
    # Fold batch stats + BN affine into per-channel scale/shift (tiny; recomputed per
    # grid step so no XLA glue dispatch is needed between the two pallas_calls).
    inv_count = 1.0 / count
    mean = jnp.sum(sum_ref[...], axis=0) * inv_count                       # (Cout, 1)
    var = jnp.maximum(jnp.sum(sq_ref[...], axis=0) * inv_count - mean * mean, 0.0)
    inv = lax.rsqrt(var + BN_EPS)
    scale = g_ref[...] * inv
    shift = b_ref[...] - mean * scale

    # Keep the shifted-slice reads below finite (tail of the staging buffer).
    zbuf_ref[:, q_pad:] = jnp.zeros((cout, zbuf_ref.shape[1] - q_pad), jnp.float32)

    for img in range(nb):
        y = _stage_conv(x_ref, img, w_ref, tap_ref, cin=cin, wp=wp, q_pad=q_pad)
        z = jnp.maximum(y * scale + shift, 0.0)            # BN affine + ReLU, (Cout, Q) f32
        # 2x2 max via three statically shifted views (right, down, down-right).
        zbuf_ref[:, :q_pad] = z
        z01 = zbuf_ref[:, 1:1 + q_pad]
        z10 = zbuf_ref[:, wp:wp + q_pad]
        z11 = zbuf_ref[:, wp + 1:wp + 1 + q_pad]
        zhv = jnp.maximum(jnp.maximum(z, z01), jnp.maximum(z10, z11))
        # Exact one-hot selection of the Ho*Wo window top-left corners (f32, 0/1 matrix).
        pooled = jnp.dot(zhv, sel_ref[...], preferred_element_type=jnp.float32)
        o_ref[:, img * hw_pool:(img + 1) * hw_pool] = pooled


@jax.jit
def conv_block_forward(x, w, b, gamma, beta):
    """x: (N, Cin, H, W) float32 NCHW. Returns (N, Cout, H//2, W//2).

    `b` (conv bias) is accepted for interface parity but not used on-device:
    training-mode BatchNorm subtracts the batch mean, which cancels a per-channel
    bias exactly (and it is zero-initialized in this module anyway).
    """
    del b
    n, cin, h, wd = x.shape
    cout = w.shape[0]
    assert h % 2 == 0 and wd % 2 == 0
    ho, wo = h // 2, wd // 2
    hw_pool = ho * wo
    wp = wd + 2                                   # padded row stride
    q_pad = _round_up(h * wp, 128)                # conv positions / image, lane-aligned
    lpad = _round_up(2 * wp + 2 + q_pad, 128)     # covers the largest tap-slice end
    zbuf_w = q_pad + _round_up(wp + 1, 128)       # staging buffer for shifted views

    # Images per grid step so the pooled output block is >= 128 lanes.
    nb = max(1, min(n, max(1, 128 // max(hw_pool, 1))))
    if n % nb != 0:
        nb = 1
    nblk = n // nb

    # ---- cheap host-side layout plumbing (bf16 activations, no im2col blow-up) ----
    xpad = jnp.pad(x, ((0, 0), (0, 0), (1, 1), (1, 1)))
    xflat = jnp.pad(xpad.reshape(n, cin, (h + 2) * wp),
                    ((0, 0), (0, 0), (0, lpad - (h + 2) * wp))).astype(jnp.bfloat16)
    # tap-stacked weights: row block t = kh*3+kw holds w[:, :, kh, kw]
    wstack = jnp.transpose(w, (0, 2, 3, 1)).reshape(cout, 9 * cin).astype(jnp.bfloat16)
    pos = jnp.arange(q_pad)
    mask = ((pos % wp < wd) & (pos < h * wp)).astype(jnp.float32).reshape(1, q_pad)
    # one-hot selection: column ho*Wo+wo picks conv position (2*ho)*wp + 2*wo.
    q_tgt = (2 * jnp.arange(ho)[:, None] * wp + 2 * jnp.arange(wo)[None, :]).reshape(-1)
    sel = (pos[:, None] == q_tgt[None, :]).astype(jnp.float32)          # (Q, Ho*Wo)
    gamma_c = gamma.reshape(cout, 1).astype(jnp.float32)
    beta_c = beta.reshape(cout, 1).astype(jnp.float32)

    mosaic = pltpu.CompilerParams(dimension_semantics=("parallel",),
                                  vmem_limit_bytes=32 * 1024 * 1024)

    # ---- pass 1: conv + per-block BN statistics (megacore-parallel) ----
    ysum, ysq = pl.pallas_call(
        functools.partial(_conv_stats_kernel, nb=nb, cin=cin, wp=wp, q_pad=q_pad),
        grid=(nblk,),
        in_specs=[
            pl.BlockSpec((nb, cin, lpad), lambda i: (i, 0, 0)),
            pl.BlockSpec((cout, 9 * cin), lambda i: (0, 0)),
            pl.BlockSpec((1, q_pad), lambda i: (0, 0)),
        ],
        out_specs=[
            pl.BlockSpec((None, cout, 1), lambda i: (i, 0, 0)),
            pl.BlockSpec((None, cout, 1), lambda i: (i, 0, 0)),
        ],
        out_shape=[
            jax.ShapeDtypeStruct((nblk, cout, 1), jnp.float32),
            jax.ShapeDtypeStruct((nblk, cout, 1), jnp.float32),
        ],
        scratch_shapes=[pltpu.VMEM((9 * cin, q_pad), jnp.bfloat16)],
        compiler_params=mosaic,
    )(xflat, wstack, mask)

    # ---- pass 2: conv recompute + BN affine + ReLU + 2x2 max-pool ----
    out_flat = pl.pallas_call(
        functools.partial(_bn_relu_pool_kernel, nb=nb, cin=cin, wp=wp, q_pad=q_pad,
                          hw_pool=hw_pool, count=float(n * h * wd)),
        grid=(nblk,),
        in_specs=[
            pl.BlockSpec((nb, cin, lpad), lambda i: (i, 0, 0)),
            pl.BlockSpec((cout, 9 * cin), lambda i: (0, 0)),
            pl.BlockSpec((nblk, cout, 1), lambda i: (0, 0, 0)),
            pl.BlockSpec((nblk, cout, 1), lambda i: (0, 0, 0)),
            pl.BlockSpec((cout, 1), lambda i: (0, 0)),
            pl.BlockSpec((cout, 1), lambda i: (0, 0)),
            pl.BlockSpec((q_pad, hw_pool), lambda i: (0, 0)),
        ],
        out_specs=pl.BlockSpec((None, cout, nb * hw_pool), lambda i: (i, 0, 0)),
        out_shape=jax.ShapeDtypeStruct((nblk, cout, nb * hw_pool), jnp.float32),
        scratch_shapes=[pltpu.VMEM((9 * cin, q_pad), jnp.bfloat16),
                        pltpu.VMEM((cout, zbuf_w), jnp.float32)],
        compiler_params=mosaic,
    )(xflat, wstack, ysum, ysq, gamma_c, beta_c, sel)

    return (out_flat.reshape(nblk, cout, nb, hw_pool)
            .transpose(0, 2, 1, 3)
            .reshape(n, cout, ho, wo))


def reference_forward(x, w, b, gamma, beta):
    """Pure-JAX reference matching the PyTorch module (training-mode BN)."""
    y = lax.conv_general_dilated(
        x, w, window_strides=(1, 1), padding=((1, 1), (1, 1)),
        dimension_numbers=("NCHW", "OIHW", "NCHW"),
    ) + b.reshape(1, -1, 1, 1)
    mean = jnp.mean(y, axis=(0, 2, 3), keepdims=True)
    var = jnp.mean((y - mean) ** 2, axis=(0, 2, 3), keepdims=True)
    y = gamma.reshape(1, -1, 1, 1) * (y - mean) * lax.rsqrt(var + BN_EPS) \
        + beta.reshape(1, -1, 1, 1)
    y = jnp.maximum(y, 0.0)
    n, c, h, wd = y.shape
    return y.reshape(n, c, h // 2, 2, wd // 2, 2).max(axis=(3, 5))


if __name__ == "__main__":
    # ConvBlock(in_channels=4, out_channels=8, kernel_size=3, max_pool=True, max_pool_factor=1.0)
    N, Cin, H, W = 2, 4, 16, 16
    Cout, KH, KW = 8, 3, 3

    key = jax.random.PRNGKey(0)
    k_w, k_g, k_x = jax.random.split(key, 3)

    # xavier_uniform_(gain=1.0) for conv weight; conv bias = 0.
    fan_in, fan_out = Cin * KH * KW, Cout * KH * KW
    bound = math.sqrt(6.0 / (fan_in + fan_out))
    conv_w = jax.random.uniform(k_w, (Cout, Cin, KH, KW), jnp.float32,
                                minval=-bound, maxval=bound)
    conv_b = jnp.zeros((Cout,), jnp.float32)
    # BatchNorm2d(affine=True): weight ~ U(0,1), bias = 0.
    bn_gamma = jax.random.uniform(k_g, (Cout,), jnp.float32, minval=0.0, maxval=1.0)
    bn_beta = jnp.zeros((Cout,), jnp.float32)

    x = jax.random.normal(k_x, (N, Cin, H, W), jnp.float32)

    out = jax.block_until_ready(conv_block_forward(x, conv_w, conv_b, bn_gamma, bn_beta))
    assert out.shape == (N, Cout, H // 2, W // 2), out.shape

    # Tight check: reference whose conv inputs carry the same bf16 rounding as the
    # kernel's MXU operands (the only intended numerical difference).
    x_bf = x.astype(jnp.bfloat16).astype(jnp.float32)
    w_bf = conv_w.astype(jnp.bfloat16).astype(jnp.float32)
    ref_bf = jax.block_until_ready(reference_forward(x_bf, w_bf, conv_b, bn_gamma, bn_beta))
    err_bf = float(jnp.max(jnp.abs(out - ref_bf)))
    assert jnp.allclose(out, ref_bf, rtol=1e-3, atol=1e-3), err_bf

    # Looser check directly against the exact f32 module semantics (bf16 MXU rounding).
    ref = jax.block_until_ready(reference_forward(x, conv_w, conv_b, bn_gamma, bn_beta))
    err_f32 = float(jnp.max(jnp.abs(out - ref)))
    assert jnp.allclose(out, ref, rtol=2e-2, atol=2e-2), err_f32

    print("KERNEL_OK")
</pallas_src>

<mosaic_0001>
module attributes {stable_mosaic.version = 11 : i64} {
  func.func @_conv_stats_kernel(%arg0: i32, %arg1: memref<2x4x512xbf16, #tpu.memory_space<vmem>>, %arg2: memref<8x36xbf16, #tpu.memory_space<vmem>>, %arg3: memref<1x384xf32, #tpu.memory_space<vmem>>, %arg4: memref<1x8x1xf32, #tpu.memory_space<vmem>>, %arg5: memref<1x8x1xf32, #tpu.memory_space<vmem>>, %arg6: memref<36x384xbf16, #tpu.memory_space<vmem>>) attributes {dimension_semantics = [#tpu.dimension_semantics<parallel>], iteration_bounds = array<i64: 1>, scalar_prefetch = 0 : i64, scratch_operands = 1 : i64, tpu.core_type = #tpu.core_type<tc>, window_params = [{transform_indices = @transform_0, window_bounds = array<i64: 2, 4, 512>}, {pipeline_mode = #tpu.pipeline_mode<synchronous>, transform_indices = @transform_1, window_bounds = array<i64: 8, 36>}, {pipeline_mode = #tpu.pipeline_mode<synchronous>, transform_indices = @transform_2, window_bounds = array<i64: 1, 384>}, {transform_indices = @transform_3, window_bounds = array<i64: 1, 8, 1>}, {transform_indices = @transform_4, window_bounds = array<i64: 1, 8, 1>}]} {
    %cst = arith.constant 0.000000e+00 : f32
    %0 = vector.broadcast %cst : f32 to vector<8x1xf32>
    %cst_0 = arith.constant 0.000000e+00 : f32
    %1 = vector.broadcast %cst_0 : f32 to vector<8x1xf32>
    %c0 = arith.constant 0 : index
    %c0_1 = arith.constant 0 : index
    %2 = vector.load %arg3[%c0, %c0_1] : memref<1x384xf32, #tpu.memory_space<vmem>>, vector<1x384xf32>
    %c0_2 = arith.constant 0 : index
    %c0_3 = arith.constant 0 : index
    %c0_4 = arith.constant 0 : index
    %3 = vector.load %arg1[%c0_2, %c0_3, %c0_4] : memref<2x4x512xbf16, #tpu.memory_space<vmem>>, vector<1x4x384xbf16>
    %4 = vector.shape_cast %3 : vector<1x4x384xbf16> to vector<4x384xbf16>
    %c0_5 = arith.constant 0 : index
    %c0_6 = arith.constant 0 : index
    %5 = vector.load %arg6[%c0_5, %c0_6] : memref<36x384xbf16, #tpu.memory_space<vmem>>, vector<4x384xbf16>
    tpu.vector_store %arg6[%c0_5, %c0_6], %4 {strides = array<i32>} : memref<36x384xbf16, #tpu.memory_space<vmem>>, vector<4x384xbf16>,
    %c0_7 = arith.constant 0 : index
    %c0_8 = arith.constant 0 : index
    %c1 = arith.constant 1 : index
    %6 = vector.load %arg1[%c0_7, %c0_8, %c1] : memref<2x4x512xbf16, #tpu.memory_space<vmem>>, vector<1x4x384xbf16>
    %7 = vector.shape_cast %6 : vector<1x4x384xbf16> to vector<4x384xbf16>
    %c4 = arith.constant 4 : index
    %c0_9 = arith.constant 0 : index
    %8 = vector.load %arg6[%c4, %c0_9] : memref<36x384xbf16, #tpu.memory_space<vmem>>, vector<4x384xbf16>
    tpu.vector_store %arg6[%c4, %c0_9], %7 {strides = array<i32>} : memref<36x384xbf16, #tpu.memory_space<vmem>>, vector<4x384xbf16>,
    %c0_10 = arith.constant 0 : index
    %c0_11 = arith.constant 0 : index
    %c2 = arith.constant 2 : index
    %9 = vector.load %arg1[%c0_10, %c0_11, %c2] : memref<2x4x512xbf16, #tpu.memory_space<vmem>>, vector<1x4x384xbf16>
    %10 = vector.shape_cast %9 : vector<1x4x384xbf16> to vector<4x384xbf16>
    %c8 = arith.constant 8 : index
    %c0_12 = arith.constant 0 : index
    %11 = vector.load %arg6[%c8, %c0_12] : memref<36x384xbf16, #tpu.memory_space<vmem>>, vector<4x384xbf16>
    tpu.vector_store %arg6[%c8, %c0_12], %10 {strides = array<i32>} : memref<36x384xbf16, #tpu.memory_space<vmem>>, vector<4x384xbf16>,
    %c0_13 = arith.constant 0 : index
    %c0_14 = arith.constant 0 : index
    %c18 = arith.constant 18 : index
    %12 = vector.load %arg1[%c0_13, %c0_14, %c18] : memref<2x4x512xbf16, #tpu.memory_space<vmem>>, vector<1x4x384xbf16>
    %13 = vector.shape_cast %12 : vector<1x4x384xbf16> to vector<4x384xbf16>
    %c12 = arith.constant 12 : index
    %c0_15 = arith.constant 0 : index
    %14 = vector.load %arg6[%c12, %c0_15] : memref<36x384xbf16, #tpu.memory_space<vmem>>, vector<4x384xbf16>
    tpu.vector_store %arg6[%c12, %c0_15], %13 {strides = array<i32>} : memref<36x384xbf16, #tpu.memory_space<vmem>>, vector<4x384xbf16>,
    %c0_16 = arith.constant 0 : index
    %c0_17 = arith.constant 0 : index
    %c19 = arith.constant 19 : index
    %15 = vector.load %arg1[%c0_16, %c0_17, %c19] : memref<2x4x512xbf16, #tpu.memory_space<vmem>>, vector<1x4x384xbf16>
    %16 = vector.shape_cast %15 : vector<1x4x384xbf16> to vector<4x384xbf16>
    %c16 = arith.constant 16 : index
    %c0_18 = arith.constant 0 : index
    %17 = vector.load %arg6[%c16, %c0_18] : memref<36x384xbf16, #tpu.memory_space<vmem>>, vector<4x384xbf16>
    tpu.vector_store %arg6[%c16, %c0_18], %16 {strides = array<i32>} : memref<36x384xbf16, #tpu.memory_space<vmem>>, vector<4x384xbf16>,
    %c0_19 = arith.constant 0 : index
    %c0_20 = arith.constant 0 : index
    %c20 = arith.constant 20 : index
    %18 = vector.load %arg1[%c0_19, %c0_20, %c20] : memref<2x4x512xbf16, #tpu.memory_space<vmem>>, vector<1x4x384xbf16>
    %19 = vector.shape_cast %18 : vector<1x4x384xbf16> to vector<4x384xbf16>
    %c20_21 = arith.constant 20 : index
    %c0_22 = arith.constant 0 : index
    %20 = vector.load %arg6[%c20_21, %c0_22] : memref<36x384xbf16, #tpu.memory_space<vmem>>, vector<4x384xbf16>
    tpu.vector_store %arg6[%c20_21, %c0_22], %19 {strides = array<i32>} : memref<36x384xbf16, #tpu.memory_space<vmem>>, vector<4x384xbf16>,
    %c0_23 = arith.constant 0 : index
    %c0_24 = arith.constant 0 : index
    %c36 = arith.constant 36 : index
    %21 = vector.load %arg1[%c0_23, %c0_24, %c36] : memref<2x4x512xbf16, #tpu.memory_space<vmem>>, vector<1x4x384xbf16>
    %22 = vector.shape_cast %21 : vector<1x4x384xbf16> to vector<4x384xbf16>
    %c24 = arith.constant 24 : index
    %c0_25 = arith.constant 0 : index
    %23 = vector.load %arg6[%c24, %c0_25] : memref<36x384xbf16, #tpu.memory_space<vmem>>, vector<4x384xbf16>
    tpu.vector_store %arg6[%c24, %c0_25], %22 {strides = array<i32>} : memref<36x384xbf16, #tpu.memory_space<vmem>>, vector<4x384xbf16>,
    %c0_26 = arith.constant 0 : index
    %c0_27 = arith.constant 0 : index
    %c37 = arith.constant 37 : index
    %24 = vector.load %arg1[%c0_26, %c0_27, %c37] : memref<2x4x512xbf16, #tpu.memory_space<vmem>>, vector<1x4x384xbf16>
    %25 = vector.shape_cast %24 : vector<1x4x384xbf16> to vector<4x384xbf16>
    %c28 = arith.constant 28 : index
    %c0_28 = arith.constant 0 : index
    %26 = vector.load %arg6[%c28, %c0_28] : memref<36x384xbf16, #tpu.memory_space<vmem>>, vector<4x384xbf16>
    tpu.vector_store %arg6[%c28, %c0_28], %25 {strides = array<i32>} : memref<36x384xbf16, #tpu.memory_space<vmem>>, vector<4x384xbf16>,
    %c0_29 = arith.constant 0 : index
    %c0_30 = arith.constant 0 : index
    %c38 = arith.constant 38 : index
    %27 = vector.load %arg1[%c0_29, %c0_30, %c38] : memref<2x4x512xbf16, #tpu.memory_space<vmem>>, vector<1x4x384xbf16>
    %28 = vector.shape_cast %27 : vector<1x4x384xbf16> to vector<4x384xbf16>
    %c32 = arith.constant 32 : index
    %c0_31 = arith.constant 0 : index
    %29 = vector.load %arg6[%c32, %c0_31] : memref<36x384xbf16, #tpu.memory_space<vmem>>, vector<4x384xbf16>
    tpu.vector_store %arg6[%c32, %c0_31], %28 {strides = array<i32>} : memref<36x384xbf16, #tpu.memory_space<vmem>>, vector<4x384xbf16>,
    %c0_32 = arith.constant 0 : index
    %c0_33 = arith.constant 0 : index
    %30 = vector.load %arg2[%c0_32, %c0_33] : memref<8x36xbf16, #tpu.memory_space<vmem>>, vector<8x36xbf16>
    %c0_34 = arith.constant 0 : index
    %c0_35 = arith.constant 0 : index
    %31 = vector.load %arg6[%c0_34, %c0_35] : memref<36x384xbf16, #tpu.memory_space<vmem>>, vector<36x384xbf16>
    %cst_36 = arith.constant dense<0.000000e+00> : vector<8x384xf32>
    %32 = tpu.matmul %30, %31, %cst_36 {dimension_numbers = #tpu.dot_dimension_numbers<[1], [0], [0], [1], [0, 0, 1, 1], [], []>} : vector<8x36xbf16>, vector<36x384xbf16>, vector<8x384xf32> -> vector<8x384xf32>
    %33 = vector.broadcast %2 : vector<1x384xf32> to vector<8x384xf32>
    %34 = arith.mulf %32, %33 : vector<8x384xf32>
    %cst_37 = arith.constant dense<0.000000e+00> : vector<8xf32>
    %35 = vector.multi_reduction <add>, %34, %cst_37 [1] : vector<8x384xf32> to vector<8xf32>
    %36 = vector.shape_cast %35 : vector<8xf32> to vector<8x1xf32>
    %37 = arith.addf %0, %36 : vector<8x1xf32>
    %38 = arith.mulf %34, %32 : vector<8x384xf32>
    %cst_38 = arith.constant dense<0.000000e+00> : vector<8xf32>
    %39 = vector.multi_reduction <add>, %38, %cst_38 [1] : vector<8x384xf32> to vector<8xf32>
    %40 = vector.shape_cast %39 : vector<8xf32> to vector<8x1xf32>
    %41 = arith.addf %1, %40 : vector<8x1xf32>
    %c1_39 = arith.constant 1 : index
    %c0_40 = arith.constant 0 : index
    %c0_41 = arith.constant 0 : index
    %42 = vector.load %arg1[%c1_39, %c0_40, %c0_41] : memref<2x4x512xbf16, #tpu.memory_space<vmem>>, vector<1x4x384xbf16>
    %43 = vector.shape_cast %42 : vector<1x4x384xbf16> to vector<4x384xbf16>
    %c0_42 = arith.constant 0 : index
    %c0_43 = arith.constant 0 : index
    %44 = vector.load %arg6[%c0_42, %c0_43] : memref<36x384xbf16, #tpu.memory_space<vmem>>, vector<4x384xbf16>
    tpu.vector_store %arg6[%c0_42, %c0_43], %43 {strides = array<i32>} : memref<36x384xbf16, #tpu.memory_space<vmem>>, vector<4x384xbf16>,
    %c1_44 = arith.constant 1 : index
    %c0_45 = arith.constant 0 : index
    %c1_46 = arith.constant 1 : index
    %45 = vector.load %arg1[%c1_44, %c0_45, %c1_46] : memref<2x4x512xbf16, #tpu.memory_space<vmem>>, vector<1x4x384xbf16>
    %46 = vector.shape_cast %45 : vector<1x4x384xbf16> to vector<4x384xbf16>
    %c4_47 = arith.constant 4 : index
    %c0_48 = arith.constant 0 : index
    %47 = vector.load %arg6[%c4_47, %c0_48] : memref<36x384xbf16, #tpu.memory_space<vmem>>, vector<4x384xbf16>
    tpu.vector_store %arg6[%c4_47, %c0_48], %46 {strides = array<i32>} : memref<36x384xbf16, #tpu.memory_space<vmem>>, vector<4x384xbf16>,
    %c1_49 = arith.constant 1 : index
    %c0_50 = arith.constant 0 : index
    %c2_51 = arith.constant 2 : index
    %48 = vector.load %arg1[%c1_49, %c0_50, %c2_51] : memref<2x4x512xbf16, #tpu.memory_space<vmem>>, vector<1x4x384xbf16>
    %49 = vector.shape_cast %48 : vector<1x4x384xbf16> to vector<4x384xbf16>
    %c8_52 = arith.constant 8 : index
    %c0_53 = arith.constant 0 : index
    %50 = vector.load %arg6[%c8_52, %c0_53] : memref<36x384xbf16, #tpu.memory_space<vmem>>, vector<4x384xbf16>
    tpu.vector_store %arg6[%c8_52, %c0_53], %49 {strides = array<i32>} : memref<36x384xbf16, #tpu.memory_space<vmem>>, vector<4x384xbf16>,
    %c1_54 = arith.constant 1 : index
    %c0_55 = arith.constant 0 : index
    %c18_56 = arith.constant 18 : index
    %51 = vector.load %arg1[%c1_54, %c0_55, %c18_56] : memref<2x4x512xbf16, #tpu.memory_space<vmem>>, vector<1x4x384xbf16>
    %52 = vector.shape_cast %51 : vector<1x4x384xbf16> to vector<4x384xbf16>
    %c12_57 = arith.constant 12 : index
    %c0_58 = arith.constant 0 : index
    %53 = vector.load %arg6[%c12_57, %c0_58] : memref<36x384xbf16, #tpu.memory_space<vmem>>, vector<4x384xbf16>
    tpu.vector_store %arg6[%c12_57, %c0_58], %52 {strides = array<i32>} : memref<36x384xbf16, #tpu.memory_space<vmem>>, vector<4x384xbf16>,
    %c1_59 = arith.constant 1 : index
    %c0_60 = arith.constant 0 : index
    %c19_61 = arith.constant 19 : index
    %54 = vector.load %arg1[%c1_59, %c0_60, %c19_61] : memref<2x4x512xbf16, #tpu.memory_space<vmem>>, vector<1x4x384xbf16>
    %55 = vector.shape_cast %54 : vector<1x4x384xbf16> to vector<4x384xbf16>
    %c16_62 = arith.constant 16 : index
    %c0_63 = arith.constant 0 : index
    %56 = vector.load %arg6[%c16_62, %c0_63] : memref<36x384xbf16, #tpu.memory_space<vmem>>, vector<4x384xbf16>
    tpu.vector_store %arg6[%c16_62, %c0_63], %55 {strides = array<i32>} : memref<36x384xbf16, #tpu.memory_space<vmem>>, vector<4x384xbf16>,
    %c1_64 = arith.constant 1 : index
    %c0_65 = arith.constant 0 : index
    %c20_66 = arith.constant 20 : index
    %57 = vector.load %arg1[%c1_64, %c0_65, %c20_66] : memref<2x4x512xbf16, #tpu.memory_space<vmem>>, vector<1x4x384xbf16>
    %58 = vector.shape_cast %57 : vector<1x4x384xbf16> to vector<4x384xbf16>
    %c20_67 = arith.constant 20 : index
    %c0_68 = arith.constant 0 : index
    %59 = vector.load %arg6[%c20_67, %c0_68] : memref<36x384xbf16, #tpu.memory_space<vmem>>, vector<4x384xbf16>
    tpu.vector_store %arg6[%c20_67, %c0_68], %58 {strides = array<i32>} : memref<36x384xbf16, #tpu.memory_space<vmem>>, vector<4x384xbf16>,
    %c1_69 = arith.constant 1 : index
    %c0_70 = arith.constant 0 : index
    %c36_71 = arith.constant 36 : index
    %60 = vector.load %arg1[%c1_69, %c0_70, %c36_71] : memref<2x4x512xbf16, #tpu.memory_space<vmem>>, vector<1x4x384xbf16>
    %61 = vector.shape_cast %60 : vector<1x4x384xbf16> to vector<4x384xbf16>
    %c24_72 = arith.constant 24 : index
    %c0_73 = arith.constant 0 : index
    %62 = vector.load %arg6[%c24_72, %c0_73] : memref<36x384xbf16, #tpu.memory_space<vmem>>, vector<4x384xbf16>
    tpu.vector_store %arg6[%c24_72, %c0_73], %61 {strides = array<i32>} : memref<36x384xbf16, #tpu.memory_space<vmem>>, vector<4x384xbf16>,
    %c1_74 = arith.constant 1 : index
    %c0_75 = arith.constant 0 : index
    %c37_76 = arith.constant 37 : index
    %63 = vector.load %arg1[%c1_74, %c0_75, %c37_76] : memref<2x4x512xbf16, #tpu.memory_space<vmem>>, vector<1x4x384xbf16>
    %64 = vector.shape_cast %63 : vector<1x4x384xbf16> to vector<4x384xbf16>
    %c28_77 = arith.constant 28 : index
    %c0_78 = arith.constant 0 : index
    %65 = vector.load %arg6[%c28_77, %c0_78] : memref<36x384xbf16, #tpu.memory_space<vmem>>, vector<4x384xbf16>
    tpu.vector_store %arg6[%c28_77, %c0_78], %64 {strides = array<i32>} : memref<36x384xbf16, #tpu.memory_space<vmem>>, vector<4x384xbf16>,
    %c1_79 = arith.constant 1 : index
    %c0_80 = arith.constant 0 : index
    %c38_81 = arith.constant 38 : index
    %66 = vector.load %arg1[%c1_79, %c0_80, %c38_81] : memref<2x4x512xbf16, #tpu.memory_space<vmem>>, vector<1x4x384xbf16>
    %67 = vector.shape_cast %66 : vector<1x4x384xbf16> to vector<4x384xbf16>
    %c32_82 = arith.constant 32 : index
    %c0_83 = arith.constant 0 : index
    %68 = vector.load %arg6[%c32_82, %c0_83] : memref<36x384xbf16, #tpu.memory_space<vmem>>, vector<4x384xbf16>
    tpu.vector_store %arg6[%c32_82, %c0_83], %67 {strides = array<i32>} : memref<36x384xbf16, #tpu.memory_space<vmem>>, vector<4x384xbf16>,
    %c0_84 = arith.constant 0 : index
    %c0_85 = arith.constant 0 : index
    %69 = vector.load %arg2[%c0_84, %c0_85] : memref<8x36xbf16, #tpu.memory_space<vmem>>, vector<8x36xbf16>
    %c0_86 = arith.constant 0 : index
    %c0_87 = arith.constant 0 : index
    %70 = vector.load %arg6[%c0_86, %c0_87] : memref<36x384xbf16, #tpu.memory_space<vmem>>, vector<36x384xbf16>
    %cst_88 = arith.constant dense<0.000000e+00> : vector<8x384xf32>
    %71 = tpu.matmul %69, %70, %cst_88 {dimension_numbers = #tpu.dot_dimension_numbers<[1], [0], [0], [1], [0, 0, 1, 1], [], []>} : vector<8x36xbf16>, vector<36x384xbf16>, vector<8x384xf32> -> vector<8x384xf32>
    %72 = vector.broadcast %2 : vector<1x384xf32> to vector<8x384xf32>
    %73 = arith.mulf %71, %72 : vector<8x384xf32>
    %cst_89 = arith.constant dense<0.000000e+00> : vector<8xf32>
    %74 = vector.multi_reduction <add>, %73, %cst_89 [1] : vector<8x384xf32> to vector<8xf32>
    %75 = vector.shape_cast %74 : vector<8xf32> to vector<8x1xf32>
    %76 = arith.addf %37, %75 : vector<8x1xf32>
    %77 = arith.mulf %73, %71 : vector<8x384xf32>
    %cst_90 = arith.constant dense<0.000000e+00> : vector<8xf32>
    %78 = vector.multi_reduction <add>, %77, %cst_90 [1] : vector<8x384xf32> to vector<8xf32>
    %79 = vector.shape_cast %78 : vector<8xf32> to vector<8x1xf32>
    %80 = arith.addf %41, %79 : vector<8x1xf32>
    %c0_91 = arith.constant 0 : index
    %c0_92 = arith.constant 0 : index
    %c0_93 = arith.constant 0 : index
    %81 = vector.load %arg4[%c0_91, %c0_92, %c0_93] : memref<1x8x1xf32, #tpu.memory_space<vmem>>, vector<1x8x1xf32>
    %82 = vector.shape_cast %81 : vector<1x8x1xf32> to vector<8x1xf32>
    %83 = vector.shape_cast %76 : vector<8x1xf32> to vector<1x8x1xf32>
    tpu.vector_store %arg4[%c0_91, %c0_92, %c0_93], %83 {strides = array<i32>} : memref<1x8x1xf32, #tpu.memory_space<vmem>>, vector<1x8x1xf32>,
    %c0_94 = arith.constant 0 : index
    %c0_95 = arith.constant 0 : index
    %c0_96 = arith.constant 0 : index
    %84 = vector.load %arg5[%c0_94, %c0_95, %c0_96] : memref<1x8x1xf32, #tpu.memory_space<vmem>>, vector<1x8x1xf32>
    %85 = vector.shape_cast %84 : vector<1x8x1xf32> to vector<8x1xf32>
    %86 = vector.shape_cast %80 : vector<8x1xf32> to vector<1x8x1xf32>
    tpu.vector_store %arg5[%c0_94, %c0_95, %c0_96], %86 {strides = array<i32>} : memref<1x8x1xf32, #tpu.memory_space<vmem>>, vector<1x8x1xf32>,
    return
  }
  func.func @transform_0(%arg0: i32) -> (i32, i32, i32) {
    %c0_i32 = arith.constant 0 : i32
    %c0_i32_0 = arith.constant 0 : i32
    %c0_i32_1 = arith.constant 0 : i32
    return %arg0, %c0_i32, %c0_i32_0 : i32, i32, i32
  }
  func.func @transform_1(%arg0: i32) -> (i32, i32) {
    %c0_i32 = arith.constant 0 : i32
    %c0_i32_0 = arith.constant 0 : i32
    %c0_i32_1 = arith.constant 0 : i32
    return %c0_i32, %c0_i32_0 : i32, i32
  }
  func.func @transform_2(%arg0: i32) -> (i32, i32) {
    %c0_i32 = arith.constant 0 : i32
    %c0_i32_0 = arith.constant 0 : i32
    %c0_i32_1 = arith.constant 0 : i32
    return %c0_i32, %c0_i32_0 : i32, i32
  }
  func.func @transform_3(%arg0: i32) -> (i32, i32, i32) {
    %c0_i32 = arith.constant 0 : i32
    %c0_i32_0 = arith.constant 0 : i32
    %c0_i32_1 = arith.constant 0 : i32
    return %arg0, %c0_i32, %c0_i32_0 : i32, i32, i32
  }
  func.func @transform_4(%arg0: i32) -> (i32, i32, i32) {
    %c0_i32 = arith.constant 0 : i32
    %c0_i32_0 = arith.constant 0 : i32
    %c0_i32_1 = arith.constant 0 : i32
    return %arg0, %c0_i32, %c0_i32_0 : i32, i32, i32
  }
}

module attributes {stable_mosaic.version = 11 : i64} {
  func.func @_bn_relu_pool_kernel(%arg0: i32, %arg1: memref<2x4x512xbf16, #tpu.memory_space<vmem>>, %arg2: memref<8x36xbf16, #tpu.memory_space<vmem>>, %arg3: memref<1x8x1xf32, #tpu.memory_space<vmem>>, %arg4: memref<1x8x1xf32, #tpu.memory_space<vmem>>, %arg5: memref<8x1xf32, #tpu.memory_space<vmem>>, %arg6: memref<8x1xf32, #tpu.memory_space<vmem>>, %arg7: memref<384x64xf32, #tpu.memory_space<vmem>>, %arg8: memref<1x8x128xf32, #tpu.memory_space<vmem>>, %arg9: memref<36x384xbf16, #tpu.memory_space<vmem>>, %arg10: memref<8x512xf32, #tpu.memory_space<vmem>>) attributes {dimension_semantics = [#tpu.dimension_semantics<parallel>], iteration_bounds = array<i64: 1>, scalar_prefetch = 0 : i64, scratch_operands = 2 : i64, tpu.core_type = #tpu.core_type<tc>, window_params = [{transform_indices = @transform_0, window_bounds = array<i64: 2, 4, 512>}, {pipeline_mode = #tpu.pipeline_mode<synchronous>, transform_indices = @transform_1, window_bounds = array<i64: 8, 36>}, {pipeline_mode = #tpu.pipeline_mode<synchronous>, transform_indices = @transform_2, window_bounds = array<i64: 1, 8, 1>}, {pipeline_mode = #tpu.pipeline_mode<synchronous>, transform_indices = @transform_3, window_bounds = array<i64: 1, 8, 1>}, {pipeline_mode = #tpu.pipeline_mode<synchronous>, transform_indices = @transform_4, window_bounds = array<i64: 8, 1>}, {pipeline_mode = #tpu.pipeline_mode<synchronous>, transform_indices = @transform_5, window_bounds = array<i64: 8, 1>}, {pipeline_mode = #tpu.pipeline_mode<synchronous>, transform_indices = @transform_6, window_bounds = array<i64: 384, 64>}, {transform_indices = @transform_7, window_bounds = array<i64: 1, 8, 128>}]} {
    %c0 = arith.constant 0 : index
    %c0_0 = arith.constant 0 : index
    %c0_1 = arith.constant 0 : index
    %0 = vector.load %arg3[%c0, %c0_0, %c0_1] : memref<1x8x1xf32, #tpu.memory_space<vmem>>, vector<1x8x1xf32>
    %cst = arith.constant dense<0.000000e+00> : vector<8x1xf32>
    %1 = vector.multi_reduction <add>, %0, %cst [0] : vector<1x8x1xf32> to vector<8x1xf32>
    %cst_2 = arith.constant 0.001953125 : f32
    %2 = vector.broadcast %cst_2 : f32 to vector<8x1xf32>
    %3 = arith.mulf %1, %2 : vector<8x1xf32>
    %c0_3 = arith.constant 0 : index
    %c0_4 = arith.constant 0 : index
    %c0_5 = arith.constant 0 : index
    %4 = vector.load %arg4[%c0_3, %c0_4, %c0_5] : memref<1x8x1xf32, #tpu.memory_space<vmem>>, vector<1x8x1xf32>
    %cst_6 = arith.constant dense<0.000000e+00> : vector<8x1xf32>
    %5 = vector.multi_reduction <add>, %4, %cst_6 [0] : vector<1x8x1xf32> to vector<8x1xf32>
    %cst_7 = arith.constant 0.001953125 : f32
    %6 = vector.broadcast %cst_7 : f32 to vector<8x1xf32>
    %7 = arith.mulf %5, %6 : vector<8x1xf32>
    %8 = arith.mulf %3, %3 : vector<8x1xf32>
    %9 = arith.subf %7, %8 : vector<8x1xf32>
    %cst_8 = arith.constant 0.000000e+00 : f32
    %10 = vector.broadcast %cst_8 : f32 to vector<8x1xf32>
    %11 = arith.maximumf %9, %10 : vector<8x1xf32>
    %cst_9 = arith.constant 9.99999974E-6 : f32
    %12 = vector.broadcast %cst_9 : f32 to vector<8x1xf32>
    %13 = arith.addf %11, %12 : vector<8x1xf32>
    %14 = math.rsqrt %13 : vector<8x1xf32>
    %c0_10 = arith.constant 0 : index
    %c0_11 = arith.constant 0 : index
    %15 = vector.load %arg5[%c0_10, %c0_11] : memref<8x1xf32, #tpu.memory_space<vmem>>, vector<8x1xf32>
    %16 = arith.mulf %15, %14 : vector<8x1xf32>
    %c0_12 = arith.constant 0 : index
    %c0_13 = arith.constant 0 : index
    %17 = vector.load %arg6[%c0_12, %c0_13] : memref<8x1xf32, #tpu.memory_space<vmem>>, vector<8x1xf32>
    %18 = arith.mulf %3, %16 : vector<8x1xf32>
    %19 = arith.subf %17, %18 : vector<8x1xf32>
    %cst_14 = arith.constant 0.000000e+00 : f32
    %20 = vector.broadcast %cst_14 : f32 to vector<8x128xf32>
    %c0_15 = arith.constant 0 : index
    %c384 = arith.constant 384 : index
    %21 = vector.load %arg10[%c0_15, %c384] : memref<8x512xf32, #tpu.memory_space<vmem>>, vector<8x128xf32>
    tpu.vector_store %arg10[%c0_15, %c384], %20 {strides = array<i32>} : memref<8x512xf32, #tpu.memory_space<vmem>>, vector<8x128xf32>,
    %c0_16 = arith.constant 0 : index
    %c0_17 = arith.constant 0 : index
    %c0_18 = arith.constant 0 : index
    %22 = vector.load %arg1[%c0_16, %c0_17, %c0_18] : memref<2x4x512xbf16, #tpu.memory_space<vmem>>, vector<1x4x384xbf16>
    %23 = vector.shape_cast %22 : vector<1x4x384xbf16> to vector<4x384xbf16>
    %c0_19 = arith.constant 0 : index
    %c0_20 = arith.constant 0 : index
    %24 = vector.load %arg9[%c0_19, %c0_20] : memref<36x384xbf16, #tpu.memory_space<vmem>>, vector<4x384xbf16>
    tpu.vector_store %arg9[%c0_19, %c0_20], %23 {strides = array<i32>} : memref<36x384xbf16, #tpu.memory_space<vmem>>, vector<4x384xbf16>,
    %c0_21 = arith.constant 0 : index
    %c0_22 = arith.constant 0 : index
    %c1 = arith.constant 1 : index
    %25 = vector.load %arg1[%c0_21, %c0_22, %c1] : memref<2x4x512xbf16, #tpu.memory_space<vmem>>, vector<1x4x384xbf16>
    %26 = vector.shape_cast %25 : vector<1x4x384xbf16> to vector<4x384xbf16>
    %c4 = arith.constant 4 : index
    %c0_23 = arith.constant 0 : index
    %27 = vector.load %arg9[%c4, %c0_23] : memref<36x384xbf16, #tpu.memory_space<vmem>>, vector<4x384xbf16>
    tpu.vector_store %arg9[%c4, %c0_23], %26 {strides = array<i32>} : memref<36x384xbf16, #tpu.memory_space<vmem>>, vector<4x384xbf16>,
    %c0_24 = arith.constant 0 : index
    %c0_25 = arith.constant 0 : index
    %c2 = arith.constant 2 : index
    %28 = vector.load %arg1[%c0_24, %c0_25, %c2] : memref<2x4x512xbf16, #tpu.memory_space<vmem>>, vector<1x4x384xbf16>
    %29 = vector.shape_cast %28 : vector<1x4x384xbf16> to vector<4x384xbf16>
    %c8 = arith.constant 8 : index
    %c0_26 = arith.constant 0 : index
    %30 = vector.load %arg9[%c8, %c0_26] : memref<36x384xbf16, #tpu.memory_space<vmem>>, vector<4x384xbf16>
    tpu.vector_store %arg9[%c8, %c0_26], %29 {strides = array<i32>} : memref<36x384xbf16, #tpu.memory_space<vmem>>, vector<4x384xbf16>,
    %c0_27 = arith.constant 0 : index
    %c0_28 = arith.constant 0 : index
    %c18 = arith.constant 18 : index
    %31 = vector.load %arg1[%c0_27, %c0_28, %c18] : memref<2x4x512xbf16, #tpu.memory_space<vmem>>, vector<1x4x384xbf16>
    %32 = vector.shape_cast %31 : vector<1x4x384xbf16> to vector<4x384xbf16>
    %c12 = arith.constant 12 : index
    %c0_29 = arith.constant 0 : index
    %33 = vector.load %arg9[%c12, %c0_29] : memref<36x384xbf16, #tpu.memory_space<vmem>>, vector<4x384xbf16>
    tpu.vector_store %arg9[%c12, %c0_29], %32 {strides = array<i32>} : memref<36x384xbf16, #tpu.memory_space<vmem>>, vector<4x384xbf16>,
    %c0_30 = arith.constant 0 : index
    %c0_31 = arith.constant 0 : index
    %c19 = arith.constant 19 : index
    %34 = vector.load %arg1[%c0_30, %c0_31, %c19] : memref<2x4x512xbf16, #tpu.memory_space<vmem>>, vector<1x4x384xbf16>
    %35 = vector.shape_cast %34 : vector<1x4x384xbf16> to vector<4x384xbf16>
    %c16 = arith.constant 16 : index
    %c0_32 = arith.constant 0 : index
    %36 = vector.load %arg9[%c16, %c0_32] : memref<36x384xbf16, #tpu.memory_space<vmem>>, vector<4x384xbf16>
    tpu.vector_store %arg9[%c16, %c0_32], %35 {strides = array<i32>} : memref<36x384xbf16, #tpu.memory_space<vmem>>, vector<4x384xbf16>,
    %c0_33 = arith.constant 0 : index
    %c0_34 = arith.constant 0 : index
    %c20 = arith.constant 20 : index
    %37 = vector.load %arg1[%c0_33, %c0_34, %c20] : memref<2x4x512xbf16, #tpu.memory_space<vmem>>, vector<1x4x384xbf16>
    %38 = vector.shape_cast %37 : vector<1x4x384xbf16> to vector<4x384xbf16>
    %c20_35 = arith.constant 20 : index
    %c0_36 = arith.constant 0 : index
    %39 = vector.load %arg9[%c20_35, %c0_36] : memref<36x384xbf16, #tpu.memory_space<vmem>>, vector<4x384xbf16>
    tpu.vector_store %arg9[%c20_35, %c0_36], %38 {strides = array<i32>} : memref<36x384xbf16, #tpu.memory_space<vmem>>, vector<4x384xbf16>,
    %c0_37 = arith.constant 0 : index
    %c0_38 = arith.constant 0 : index
    %c36 = arith.constant 36 : index
    %40 = vector.load %arg1[%c0_37, %c0_38, %c36] : memref<2x4x512xbf16, #tpu.memory_space<vmem>>, vector<1x4x384xbf16>
    %41 = vector.shape_cast %40 : vector<1x4x384xbf16> to vector<4x384xbf16>
    %c24 = arith.constant 24 : index
    %c0_39 = arith.constant 0 : index
    %42 = vector.load %arg9[%c24, %c0_39] : memref<36x384xbf16, #tpu.memory_space<vmem>>, vector<4x384xbf16>
    tpu.vector_store %arg9[%c24, %c0_39], %41 {strides = array<i32>} : memref<36x384xbf16, #tpu.memory_space<vmem>>, vector<4x384xbf16>,
    %c0_40 = arith.constant 0 : index
    %c0_41 = arith.constant 0 : index
    %c37 = arith.constant 37 : index
    %43 = vector.load %arg1[%c0_40, %c0_41, %c37] : memref<2x4x512xbf16, #tpu.memory_space<vmem>>, vector<1x4x384xbf16>
    %44 = vector.shape_cast %43 : vector<1x4x384xbf16> to vector<4x384xbf16>
    %c28 = arith.constant 28 : index
    %c0_42 = arith.constant 0 : index
    %45 = vector.load %arg9[%c28, %c0_42] : memref<36x384xbf16, #tpu.memory_space<vmem>>, vector<4x384xbf16>
    tpu.vector_store %arg9[%c28, %c0_42], %44 {strides = array<i32>} : memref<36x384xbf16, #tpu.memory_space<vmem>>, vector<4x384xbf16>,
    %c0_43 = arith.constant 0 : index
    %c0_44 = arith.constant 0 : index
    %c38 = arith.constant 38 : index
    %46 = vector.load %arg1[%c0_43, %c0_44, %c38] : memref<2x4x512xbf16, #tpu.memory_space<vmem>>, vector<1x4x384xbf16>
    %47 = vector.shape_cast %46 : vector<1x4x384xbf16> to vector<4x384xbf16>
    %c32 = arith.constant 32 : index
    %c0_45 = arith.constant 0 : index
    %48 = vector.load %arg9[%c32, %c0_45] : memref<36x384xbf16, #tpu.memory_space<vmem>>, vector<4x384xbf16>
    tpu.vector_store %arg9[%c32, %c0_45], %47 {strides = array<i32>} : memref<36x384xbf16, #tpu.memory_space<vmem>>, vector<4x384xbf16>,
    %c0_46 = arith.constant 0 : index
    %c0_47 = arith.constant 0 : index
    %49 = vector.load %arg2[%c0_46, %c0_47] : memref<8x36xbf16, #tpu.memory_space<vmem>>, vector<8x36xbf16>
    %c0_48 = arith.constant 0 : index
    %c0_49 = arith.constant 0 : index
    %50 = vector.load %arg9[%c0_48, %c0_49] : memref<36x384xbf16, #tpu.memory_space<vmem>>, vector<36x384xbf16>
    %cst_50 = arith.constant dense<0.000000e+00> : vector<8x384xf32>
    %51 = tpu.matmul %49, %50, %cst_50 {dimension_numbers = #tpu.dot_dimension_numbers<[1], [0], [0], [1], [0, 0, 1, 1], [], []>} : vector<8x36xbf16>, vector<36x384xbf16>, vector<8x384xf32> -> vector<8x384xf32>
    %52 = vector.broadcast %16 : vector<8x1xf32> to vector<8x384xf32>
    %53 = arith.mulf %51, %52 : vector<8x384xf32>
    %54 = vector.broadcast %19 : vector<8x1xf32> to vector<8x384xf32>
    %55 = arith.addf %53, %54 : vector<8x384xf32>
    %cst_51 = arith.constant 0.000000e+00 : f32
    %56 = vector.broadcast %cst_51 : f32 to vector<8x384xf32>
    %57 = arith.maximumf %55, %56 : vector<8x384xf32>
    %c0_52 = arith.constant 0 : index
    %c0_53 = arith.constant 0 : index
    %58 = vector.load %arg10[%c0_52, %c0_53] : memref<8x512xf32, #tpu.memory_space<vmem>>, vector<8x384xf32>
    tpu.vector_store %arg10[%c0_52, %c0_53], %57 {strides = array<i32>} : memref<8x512xf32, #tpu.memory_space<vmem>>, vector<8x384xf32>,
    %c0_54 = arith.constant 0 : index
    %c1_55 = arith.constant 1 : index
    %59 = vector.load %arg10[%c0_54, %c1_55] : memref<8x512xf32, #tpu.memory_space<vmem>>, vector<8x384xf32>
    %c0_56 = arith.constant 0 : index
    %c18_57 = arith.constant 18 : index
    %60 = vector.load %arg10[%c0_56, %c18_57] : memref<8x512xf32, #tpu.memory_space<vmem>>, vector<8x384xf32>
    %c0_58 = arith.constant 0 : index
    %c19_59 = arith.constant 19 : index
    %61 = vector.load %arg10[%c0_58, %c19_59] : memref<8x512xf32, #tpu.memory_space<vmem>>, vector<8x384xf32>
    %62 = arith.maximumf %57, %59 : vector<8x384xf32>
    %63 = arith.maximumf %60, %61 : vector<8x384xf32>
    %64 = arith.maximumf %62, %63 : vector<8x384xf32>
    %c0_60 = arith.constant 0 : index
    %c0_61 = arith.constant 0 : index
    %65 = vector.load %arg7[%c0_60, %c0_61] : memref<384x64xf32, #tpu.memory_space<vmem>>, vector<384x64xf32>
    %cst_62 = arith.constant dense<0.000000e+00> : vector<8x64xf32>
    %66 = tpu.matmul %64, %65, %cst_62 {dimension_numbers = #tpu.dot_dimension_numbers<[1], [0], [0], [1], [0, 0, 1, 1], [], []>} : vector<8x384xf32>, vector<384x64xf32>, vector<8x64xf32> -> vector<8x64xf32>
    %c0_63 = arith.constant 0 : index
    %c0_64 = arith.constant 0 : index
    %c0_65 = arith.constant 0 : index
    %67 = vector.load %arg8[%c0_63, %c0_64, %c0_65] : memref<1x8x128xf32, #tpu.memory_space<vmem>>, vector<1x8x64xf32>
    %68 = vector.shape_cast %67 : vector<1x8x64xf32> to vector<8x64xf32>
    %69 = vector.shape_cast %66 : vector<8x64xf32> to vector<1x8x64xf32>
    tpu.vector_store %arg8[%c0_63, %c0_64, %c0_65], %69 {strides = array<i32>} : memref<1x8x128xf32, #tpu.memory_space<vmem>>, vector<1x8x64xf32>,
    %c1_66 = arith.constant 1 : index
    %c0_67 = arith.constant 0 : index
    %c0_68 = arith.constant 0 : index
    %70 = vector.load %arg1[%c1_66, %c0_67, %c0_68] : memref<2x4x512xbf16, #tpu.memory_space<vmem>>, vector<1x4x384xbf16>
    %71 = vector.shape_cast %70 : vector<1x4x384xbf16> to vector<4x384xbf16>
    %c0_69 = arith.constant 0 : index
    %c0_70 = arith.constant 0 : index
    %72 = vector.load %arg9[%c0_69, %c0_70] : memref<36x384xbf16, #tpu.memory_space<vmem>>, vector<4x384xbf16>
    tpu.vector_store %arg9[%c0_69, %c0_70], %71 {strides = array<i32>} : memref<36x384xbf16, #tpu.memory_space<vmem>>, vector<4x384xbf16>,
    %c1_71 = arith.constant 1 : index
    %c0_72 = arith.constant 0 : index
    %c1_73 = arith.constant 1 : index
    %73 = vector.load %arg1[%c1_71, %c0_72, %c1_73] : memref<2x4x512xbf16, #tpu.memory_space<vmem>>, vector<1x4x384xbf16>
    %74 = vector.shape_cast %73 : vector<1x4x384xbf16> to vector<4x384xbf16>
    %c4_74 = arith.constant 4 : index
    %c0_75 = arith.constant 0 : index
    %75 = vector.load %arg9[%c4_74, %c0_75] : memref<36x384xbf16, #tpu.memory_space<vmem>>, vector<4x384xbf16>
    tpu.vector_store %arg9[%c4_74, %c0_75], %74 {strides = array<i32>} : memref<36x384xbf16, #tpu.memory_space<vmem>>, vector<4x384xbf16>,
    %c1_76 = arith.constant 1 : index
    %c0_77 = arith.constant 0 : index
    %c2_78 = arith.constant 2 : index
    %76 = vector.load %arg1[%c1_76, %c0_77, %c2_78] : memref<2x4x512xbf16, #tpu.memory_space<vmem>>, vector<1x4x384xbf16>
    %77 = vector.shape_cast %76 : vector<1x4x384xbf16> to vector<4x384xbf16>
    %c8_79 = arith.constant 8 : index
    %c0_80 = arith.constant 0 : index
    %78 = vector.load %arg9[%c8_79, %c0_80] : memref<36x384xbf16, #tpu.memory_space<vmem>>, vector<4x384xbf16>
    tpu.vector_store %arg9[%c8_79, %c0_80], %77 {strides = array<i32>} : memref<36x384xbf16, #tpu.memory_space<vmem>>, vector<4x384xbf16>,
    %c1_81 = arith.constant 1 : index
    %c0_82 = arith.constant 0 : index
    %c18_83 = arith.constant 18 : index
    %79 = vector.load %arg1[%c1_81, %c0_82, %c18_83] : memref<2x4x512xbf16, #tpu.memory_space<vmem>>, vector<1x4x384xbf16>
    %80 = vector.shape_cast %79 : vector<1x4x384xbf16> to vector<4x384xbf16>
    %c12_84 = arith.constant 12 : index
    %c0_85 = arith.constant 0 : index
    %81 = vector.load %arg9[%c12_84, %c0_85] : memref<36x384xbf16, #tpu.memory_space<vmem>>, vector<4x384xbf16>
    tpu.vector_store %arg9[%c12_84, %c0_85], %80 {strides = array<i32>} : memref<36x384xbf16, #tpu.memory_space<vmem>>, vector<4x384xbf16>,
    %c1_86 = arith.constant 1 : index
    %c0_87 = arith.constant 0 : index
    %c19_88 = arith.constant 19 : index
    %82 = vector.load %arg1[%c1_86, %c0_87, %c19_88] : memref<2x4x512xbf16, #tpu.memory_space<vmem>>, vector<1x4x384xbf16>
    %83 = vector.shape_cast %82 : vector<1x4x384xbf16> to vector<4x384xbf16>
    %c16_89 = arith.constant 16 : index
    %c0_90 = arith.constant 0 : index
    %84 = vector.load %arg9[%c16_89, %c0_90] : memref<36x384xbf16, #tpu.memory_space<vmem>>, vector<4x384xbf16>
    tpu.vector_store %arg9[%c16_89, %c0_90], %83 {strides = array<i32>} : memref<36x384xbf16, #tpu.memory_space<vmem>>, vector<4x384xbf16>,
    %c1_91 = arith.constant 1 : index
    %c0_92 = arith.constant 0 : index
    %c20_93 = arith.constant 20 : index
    %85 = vector.load %arg1[%c1_91, %c0_92, %c20_93] : memref<2x4x512xbf16, #tpu.memory_space<vmem>>, vector<1x4x384xbf16>
    %86 = vector.shape_cast %85 : vector<1x4x384xbf16> to vector<4x384xbf16>
    %c20_94 = arith.constant 20 : index
    %c0_95 = arith.constant 0 : index
    %87 = vector.load %arg9[%c20_94, %c0_95] : memref<36x384xbf16, #tpu.memory_space<vmem>>, vector<4x384xbf16>
    tpu.vector_store %arg9[%c20_94, %c0_95], %86 {strides = array<i32>} : memref<36x384xbf16, #tpu.memory_space<vmem>>, vector<4x384xbf16>,
    %c1_96 = arith.constant 1 : index
    %c0_97 = arith.constant 0 : index
    %c36_98 = arith.constant 36 : index
    %88 = vector.load %arg1[%c1_96, %c0_97, %c36_98] : memref<2x4x512xbf16, #tpu.memory_space<vmem>>, vector<1x4x384xbf16>
    %89 = vector.shape_cast %88 : vector<1x4x384xbf16> to vector<4x384xbf16>
    %c24_99 = arith.constant 24 : index
    %c0_100 = arith.constant 0 : index
    %90 = vector.load %arg9[%c24_99, %c0_100] : memref<36x384xbf16, #tpu.memory_space<vmem>>, vector<4x384xbf16>
    tpu.vector_store %arg9[%c24_99, %c0_100], %89 {strides = array<i32>} : memref<36x384xbf16, #tpu.memory_space<vmem>>, vector<4x384xbf16>,
    %c1_101 = arith.constant 1 : index
    %c0_102 = arith.constant 0 : index
    %c37_103 = arith.constant 37 : index
    %91 = vector.load %arg1[%c1_101, %c0_102, %c37_103] : memref<2x4x512xbf16, #tpu.memory_space<vmem>>, vector<1x4x384xbf16>
    %92 = vector.shape_cast %91 : vector<1x4x384xbf16> to vector<4x384xbf16>
    %c28_104 = arith.constant 28 : index
    %c0_105 = arith.constant 0 : index
    %93 = vector.load %arg9[%c28_104, %c0_105] : memref<36x384xbf16, #tpu.memory_space<vmem>>, vector<4x384xbf16>
    tpu.vector_store %arg9[%c28_104, %c0_105], %92 {strides = array<i32>} : memref<36x384xbf16, #tpu.memory_space<vmem>>, vector<4x384xbf16>,
    %c1_106 = arith.constant 1 : index
    %c0_107 = arith.constant 0 : index
    %c38_108 = arith.constant 38 : index
    %94 = vector.load %arg1[%c1_106, %c0_107, %c38_108] : memref<2x4x512xbf16, #tpu.memory_space<vmem>>, vector<1x4x384xbf16>
    %95 = vector.shape_cast %94 : vector<1x4x384xbf16> to vector<4x384xbf16>
    %c32_109 = arith.constant 32 : index
    %c0_110 = arith.constant 0 : index
    %96 = vector.load %arg9[%c32_109, %c0_110] : memref<36x384xbf16, #tpu.memory_space<vmem>>, vector<4x384xbf16>
    tpu.vector_store %arg9[%c32_109, %c0_110], %95 {strides = array<i32>} : memref<36x384xbf16, #tpu.memory_space<vmem>>, vector<4x384xbf16>,
    %c0_111 = arith.constant 0 : index
    %c0_112 = arith.constant 0 : index
    %97 = vector.load %arg2[%c0_111, %c0_112] : memref<8x36xbf16, #tpu.memory_space<vmem>>, vector<8x36xbf16>
    %c0_113 = arith.constant 0 : index
    %c0_114 = arith.constant 0 : index
    %98 = vector.load %arg9[%c0_113, %c0_114] : memref<36x384xbf16, #tpu.memory_space<vmem>>, vector<36x384xbf16>
    %cst_115 = arith.constant dense<0.000000e+00> : vector<8x384xf32>
    %99 = tpu.matmul %97, %98, %cst_115 {dimension_numbers = #tpu.dot_dimension_numbers<[1], [0], [0], [1], [0, 0, 1, 1], [], []>} : vector<8x36xbf16>, vector<36x384xbf16>, vector<8x384xf32> -> vector<8x384xf32>
    %100 = vector.broadcast %16 : vector<8x1xf32> to vector<8x384xf32>
    %101 = arith.mulf %99, %100 : vector<8x384xf32>
    %102 = vector.broadcast %19 : vector<8x1xf32> to vector<8x384xf32>
    %103 = arith.addf %101, %102 : vector<8x384xf32>
    %cst_116 = arith.constant 0.000000e+00 : f32
    %104 = vector.broadcast %cst_116 : f32 to vector<8x384xf32>
    %105 = arith.maximumf %103, %104 : vector<8x384xf32>
    %c0_117 = arith.constant 0 : index
    %c0_118 = arith.constant 0 : index
    %106 = vector.load %arg10[%c0_117, %c0_118] : memref<8x512xf32, #tpu.memory_space<vmem>>, vector<8x384xf32>
    tpu.vector_store %arg10[%c0_117, %c0_118], %105 {strides = array<i32>} : memref<8x512xf32, #tpu.memory_space<vmem>>, vector<8x384xf32>,
    %c0_119 = arith.constant 0 : index
    %c1_120 = arith.constant 1 : index
    %107 = vector.load %arg10[%c0_119, %c1_120] : memref<8x512xf32, #tpu.memory_space<vmem>>, vector<8x384xf32>
    %c0_121 = arith.constant 0 : index
    %c18_122 = arith.constant 18 : index
    %108 = vector.load %arg10[%c0_121, %c18_122] : memref<8x512xf32, #tpu.memory_space<vmem>>, vector<8x384xf32>
    %c0_123 = arith.constant 0 : index
    %c19_124 = arith.constant 19 : index
    %109 = vector.load %arg10[%c0_123, %c19_124] : memref<8x512xf32, #tpu.memory_space<vmem>>, vector<8x384xf32>
    %110 = arith.maximumf %105, %107 : vector<8x384xf32>
    %111 = arith.maximumf %108, %109 : vector<8x384xf32>
    %112 = arith.maximumf %110, %111 : vector<8x384xf32>
    %c0_125 = arith.constant 0 : index
    %c0_126 = arith.constant 0 : index
    %113 = vector.load %arg7[%c0_125, %c0_126] : memref<384x64xf32, #tpu.memory_space<vmem>>, vector<384x64xf32>
    %cst_127 = arith.constant dense<0.000000e+00> : vector<8x64xf32>
    %114 = tpu.matmul %112, %113, %cst_127 {dimension_numbers = #tpu.dot_dimension_numbers<[1], [0], [0], [1], [0, 0, 1, 1], [], []>} : vector<8x384xf32>, vector<384x64xf32>, vector<8x64xf32> -> vector<8x64xf32>
    %c0_128 = arith.constant 0 : index
    %c0_129 = arith.constant 0 : index
    %c64 = arith.constant 64 : index
    %115 = vector.load %arg8[%c0_128, %c0_129, %c64] : memref<1x8x128xf32, #tpu.memory_space<vmem>>, vector<1x8x64xf32>
    %116 = vector.shape_cast %115 : vector<1x8x64xf32> to vector<8x64xf32>
    %117 = vector.shape_cast %114 : vector<8x64xf32> to vector<1x8x64xf32>
    tpu.vector_store %arg8[%c0_128, %c0_129, %c64], %117 {strides = array<i32>} : memref<1x8x128xf32, #tpu.memory_space<vmem>>, vector<1x8x64xf32>,
    return
  }
  func.func @transform_0(%arg0: i32) -> (i32, i32, i32) {
    %c0_i32 = arith.constant 0 : i32
    %c0_i32_0 = arith.constant 0 : i32
    %c0_i32_1 = arith.constant 0 : i32
    return %arg0, %c0_i32, %c0_i32_0 : i32, i32, i32
  }
  func.func @transform_1(%arg0: i32) -> (i32, i32) {
    %c0_i32 = arith.constant 0 : i32
    %c0_i32_0 = arith.constant 0 : i32
    %c0_i32_1 = arith.constant 0 : i32
    return %c0_i32, %c0_i32_0 : i32, i32
  }
  func.func @transform_2(%arg0: i32) -> (i32, i32, i32) {
    %c0_i32 = arith.constant 0 : i32
    %c0_i32_0 = arith.constant 0 : i32
    %c0_i32_1 = arith.constant 0 : i32
    %c0_i32_2 = arith.constant 0 : i32
    return %c0_i32, %c0_i32_0, %c0_i32_1 : i32, i32, i32
  }
  func.func @transform_3(%arg0: i32) -> (i32, i32, i32) {
    %c0_i32 = arith.constant 0 : i32
    %c0_i32_0 = arith.constant 0 : i32
    %c0_i32_1 = arith.constant 0 : i32
    %c0_i32_2 = arith.constant 0 : i32
    return %c0_i32, %c0_i32_0, %c0_i32_1 : i32, i32, i32
  }
  func.func @transform_4(%arg0: i32) -> (i32, i32) {
    %c0_i32 = arith.constant 0 : i32
    %c0_i32_0 = arith.constant 0 : i32
    %c0_i32_1 = arith.constant 0 : i32
    return %c0_i32, %c0_i32_0 : i32, i32
  }
  func.func @transform_5(%arg0: i32) -> (i32, i32) {
    %c0_i32 = arith.constant 0 : i32
    %c0_i32_0 = arith.constant 0 : i32
    %c0_i32_1 = arith.constant 0 : i32
    return %c0_i32, %c0_i32_0 : i32, i32
  }
  func.func @transform_6(%arg0: i32) -> (i32, i32) {
    %c0_i32 = arith.constant 0 : i32
    %c0_i32_0 = arith.constant 0 : i32
    %c0_i32_1 = arith.constant 0 : i32
    return %c0_i32, %c0_i32_0 : i32, i32
  }
  func.func @transform_7(%arg0: i32) -> (i32, i32, i32) {
    %c0_i32 = arith.constant 0 : i32
    %c0_i32_0 = arith.constant 0 : i32
    %c0_i32_1 = arith.constant 0 : i32
    return %arg0, %c0_i32, %c0_i32_0 : i32, i32, i32
  }
}

</mosaic_0001>

<llo_original>
// kernel: conv_block_forward.2
$region0: #{conv_block_forward.2}
  #allocation0 [shape = 'u32[]', space=smem, size = 0x4, offset = 0x4, fixed_abs, tag = 'smem constant byte address 0x4 - core index']
  #allocation1 [shape = 'u32[144,128]{1,0:T(1,128)}', space=vmem, size = 0x12000, scoped, tag = 'internal scratch']
  #allocation2 [shape = 'bf16[36,384]{1,0:T(8,128)(2,1)}', space=vmem, size = 0x7800, scoped, tag = 'scratch operand']
  %s0 = inlined_call_operand.vmem [shape: bf16[2,4,512], index: 0, kind: input, shape index: {}]
  %s1 = inlined_call_operand.vmem [shape: bf16[8,36], index: 1, kind: input, shape index: {}]
  %s2 = inlined_call_operand.vmem [shape: f32[1,384], index: 2, kind: input, shape index: {}]
  %s3 = inlined_call_operand.vmem [shape: f32[1,8,1], index: 3, kind: output, shape index: {0}]
  %s4 = inlined_call_operand.vmem [shape: f32[1,8,1], index: 4, kind: output, shape index: {1}]
  %5 = xla_tuple %s3, %s4
  %s6 = sld [smem:[#allocation0]]
  $region30: #{conv_block_forward.2} parent=0
    _
  %s8 = ssub.s32 1, %s6
  %s9 = scalar_select 0, %s8, %s6
  // Predicated region
  $region2: #{conv_block_forward.2} parent=0 // pred_check
    _
  $region3: #{conv_block_forward.2} parent=0 // pred_check_branch
    %11 = sbr.rel (0) target = $region5
  $region4: #{conv_block_forward.2} parent=0 // pred_region
    _
  $region5: #{conv_block_forward.2} parent=0 // pred_fallthru
    _
  // Predicated region
  $region6: #{conv_block_forward.2} parent=0 // pred_check
    _
  $region7: #{conv_block_forward.2} parent=0 // pred_check_branch
    %13 = sbr.rel (0) target = $region9
  $region8: #{conv_block_forward.2} parent=0 // pred_region
    _
  $region9: #{conv_block_forward.2} parent=0 // pred_fallthru
    _
  // Predicated region
  $region10: #{conv_block_forward.2} parent=0 // pred_check
    _
  $region11: #{conv_block_forward.2} parent=0 // pred_check_branch
    %15 = sbr.rel (0) target = $region13
  $region12: #{conv_block_forward.2} parent=0 // pred_region
    _
  $region13: #{conv_block_forward.2} parent=0 // pred_fallthru
    _
  %v17 = vld [vmem:[%s2] sm:$0x7]
  %v18 = vld [vmem:[%s0] sm:$0x3f]
  %v20 = vcombine.high %v18, %v18
  %v22 = vunpack.c.l.s4 1983009808
  %v23 = vunpack.c.0.s8 %v22
  %v24 = vlaneseq
  %v25 = vshrl.u32 %v24, 7
  %v26 = vsub.s32 %v23, %v25
  %v27 = vrot.slane %v18, %v26
  %v29 = vunpack.c.l.s4 1983009808
  %v30 = vunpack.c.0.s8 %v29
  %v31 = vlaneseq
  %v32 = vshrl.u32 %v31, 7
  %v33 = vsub.s32 %v30, %v32
  %v34 = vrot.slane %v20, %v33
  %37 = vst [vmem:[#allocation2] sm:$0x33] %v27
  %38 = vst [vmem:[#allocation2 + $0x8] sm:$0x3] %v34
  %v39 = vld [vmem:[%s0] sm:$0xff]
  %v41 = vcombine.low %v39, %v39
  %v43 = vunpack.c.l.s4 1983009808
  %v44 = vunpack.c.0.s8 %v43
  %v45 = vlaneseq
  %v46 = vshrl.u32 %v45, 7
  %v47 = vsub.s32 %v44, %v46
  %v48 = vrot.slane %v41, %v47
  %v50 = vunpack.c.l.s4 1983009808
  %v51 = vunpack.c.0.s8 %v50
  %v52 = vlaneseq
  %v53 = vshrl.u32 %v52, 7
  %v54 = vsub.s32 %v51, %v53
  %v55 = vrot.slane %v39, %v54
  %56 = vrot.lane.b32.xlu0 %v48, 127
  %v57 = vpop.permute.xlu0 %56
  %58 = vrot.lane.b32.xlu0 %v55, 127
  %v59 = vpop.permute.xlu0 %58
  %v60 = vrot.slane %v57, 4
  %v61 = vrot.slane %v59, 4
  %vm62 = vcmask 1043456
  %v63 = vsel %vm62, %v60, %v61
  %vm64 = vcmask 1039360
  %v65 = vsel %vm64, %v57, %v63
  %v66 = vsel %vm64, %v59, %v61
  %69 = vst [vmem:[#allocation2] sm:$0xcc] %v65
  %70 = vst [vmem:[#allocation2 + $0x8] sm:$0xc] %v66
  %v71 = vld [vmem:[%s0] sm:$0xff]
  %v73 = vcombine.high %v71, %v71
  %v75 = vunpack.c.l.s4 1983009808
  %v76 = vunpack.c.0.s8 %v75
  %v77 = vlaneseq
  %v78 = vshrl.u32 %v77, 7
  %v79 = vsub.s32 %v76, %v78
  %v80 = vrot.slane %v71, %v79
  %v82 = vunpack.c.l.s4 1983009808
  %v83 = vunpack.c.0.s8 %v82
  %v84 = vlaneseq
  %v85 = vshrl.u32 %v84, 7
  %v86 = vsub.s32 %v83, %v85
  %v87 = vrot.slane %v73, %v86
  %88 = vrot.lane.b32.xlu0 %v80, 126
  %v89 = vpop.permute.xlu0 %88
  %90 = vrot.lane.b32.xlu0 %v87, 126
  %v91 = vpop.permute.xlu0 %90
  %v92 = vrot.slane %v89, 4
  %v93 = vrot.slane %v91, 4
  %v94 = vsel %vm62, %v92, %v93
  %vm95 = vcmask 1031168
  %v96 = vsel %vm95, %v89, %v94
  %v97 = vsel %vm95, %v91, %v93
  %100 = vst [vmem:[#allocation2 + $0xc] sm:$0x33] %v96
  %101 = vst [vmem:[#allocation2 + $0x14] sm:$0x3] %v97
  %v102 = vld [vmem:[%s0] sm:$0xff]
  %v104 = vcombine.low %v102, %v102
  %v106 = vunpack.c.l.s4 1983009808
  %v107 = vunpack.c.0.s8 %v106
  %v108 = vlaneseq
  %v109 = vshrl.u32 %v108, 7
  %v110 = vsub.s32 %v107, %v109
  %v111 = vrot.slane %v104, %v110
  %v113 = vunpack.c.l.s4 1983009808
  %v114 = vunpack.c.0.s8 %v113
  %v115 = vlaneseq
  %v116 = vshrl.u32 %v115, 7
  %v117 = vsub.s32 %v114, %v116
  %v118 = vrot.slane %v102, %v117
  %119 = vrot.lane.b32.xlu0 %v111, 110
  %v120 = vpop.permute.xlu0 %119
  %121 = vrot.lane.b32.xlu0 %v118, 110
  %v122 = vpop.permute.xlu0 %121
  %v123 = vrot.slane %v120, 4
  %v124 = vrot.slane %v122, 4
  %v125 = vsel %vm62, %v123, %v124
  %vm126 = vcmask 900096
  %v127 = vsel %vm126, %v120, %v125
  %v128 = vsel %vm126, %v122, %v124
  %131 = vst [vmem:[#allocation2 + $0xc] sm:$0xcc] %v127
  %132 = vst [vmem:[#allocation2 + $0x14] sm:$0xc] %v128
  %v133 = vld [vmem:[%s0] sm:$0xff]
  %v135 = vcombine.high %v133, %v133
  %v137 = vunpack.c.l.s4 1983009808
  %v138 = vunpack.c.0.s8 %v137
  %v139 = vlaneseq
  %v140 = vshrl.u32 %v139, 7
  %v141 = vsub.s32 %v138, %v140
  %v142 = vrot.slane %v133, %v141
  %v144 = vunpack.c.l.s4 1983009808
  %v145 = vunpack.c.0.s8 %v144
  %v146 = vlaneseq
  %v147 = vshrl.u32 %v146, 7
  %v148 = vsub.s32 %v145, %v147
  %v149 = vrot.slane %v135, %v148
  %150 = vrot.lane.b32.xlu0 %v142, 109
  %v151 = vpop.permute.xlu0 %150
  %152 = vrot.lane.b32.xlu0 %v149, 109
  %v153 = vpop.permute.xlu0 %152
  %v154 = vrot.slane %v151, 4
  %v155 = vrot.slane %v153, 4
  %v156 = vsel %vm62, %v154, %v155
  %vm157 = vcmask 891904
  %v158 = vsel %vm157, %v151, %v156
  %v159 = vsel %vm157, %v153, %v155
  %162 = vst [vmem:[#allocation2 + $0x18] sm:$0x33] %v158
  %163 = vst [vmem:[#allocation2 + $0x20] sm:$0x3] %v159
  %v164 = vld [vmem:[%s0] sm:$0xff]
  %v166 = vcombine.low %v164, %v164
  %v168 = vunpack.c.l.s4 1983009808
  %v169 = vunpack.c.0.s8 %v168
  %v170 = vlaneseq
  %v171 = vshrl.u32 %v170, 7
  %v172 = vsub.s32 %v169, %v171
  %v173 = vrot.slane %v166, %v172
  %v175 = vunpack.c.l.s4 1983009808
  %v176 = vunpack.c.0.s8 %v175
  %v177 = vlaneseq
  %v178 = vshrl.u32 %v177, 7
  %v179 = vsub.s32 %v176, %v178
  %v180 = vrot.slane %v164, %v179
  %181 = vrot.lane.b32.xlu0 %v173, 108
  %v182 = vpop.permute.xlu0 %181
  %183 = vrot.lane.b32.xlu0 %v180, 108
  %v184 = vpop.permute.xlu0 %183
  %v185 = vrot.slane %v182, 4
  %v186 = vrot.slane %v184, 4
  %v187 = vsel %vm62, %v185, %v186
  %vm188 = vcmask 883712
  %v189 = vsel %vm188, %v182, %v187
  %v190 = vsel %vm188, %v184, %v186
  %193 = vst [vmem:[#allocation2 + $0x18] sm:$0xcc] %v189
  %194 = vst [vmem:[#allocation2 + $0x20] sm:$0xc] %v190
  %v195 = vld [vmem:[%s0] sm:$0xff]
  %v197 = vcombine.high %v195, %v195
  %v199 = vunpack.c.l.s4 1983009808
  %v200 = vunpack.c.0.s8 %v199
  %v201 = vlaneseq
  %v202 = vshrl.u32 %v201, 7
  %v203 = vsub.s32 %v200, %v202
  %v204 = vrot.slane %v195, %v203
  %v206 = vunpack.c.l.s4 1983009808
  %v207 = vunpack.c.0.s8 %v206
  %v208 = vlaneseq
  %v209 = vshrl.u32 %v208, 7
  %v210 = vsub.s32 %v207, %v209
  %v211 = vrot.slane %v197, %v210
  %212 = vrot.lane.b32.xlu0 %v204, 92
  %v213 = vpop.permute.xlu0 %212
  %214 = vrot.lane.b32.xlu0 %v211, 92
  %v215 = vpop.permute.xlu0 %214
  %v216 = vrot.slane %v213, 4
  %v217 = vrot.slane %v215, 4
  %v218 = vsel %vm62, %v216, %v217
  %vm219 = vcmask 752640
  %v220 = vsel %vm219, %v213, %v218
  %v221 = vsel %vm219, %v215, %v217
  %224 = vst [vmem:[#allocation2 + $0x24] sm:$0x33] %v220
  %225 = vst [vmem:[#allocation2 + $0x2c] sm:$0x3] %v221
  %v226 = vld [vmem:[%s0] sm:$0xff]
  %v228 = vcombine.low %v226, %v226
  %v230 = vunpack.c.l.s4 1983009808
  %v231 = vunpack.c.0.s8 %v230
  %v232 = vlaneseq
  %v233 = vshrl.u32 %v232, 7
  %v234 = vsub.s32 %v231, %v233
  %v235 = vrot.slane %v228, %v234
  %v237 = vunpack.c.l.s4 1983009808
  %v238 = vunpack.c.0.s8 %v237
  %v239 = vlaneseq
  %v240 = vshrl.u32 %v239, 7
  %v241 = vsub.s32 %v238, %v240
  %v242 = vrot.slane %v226, %v241
  %243 = vrot.lane.b32.xlu0 %v235, 91
  %v244 = vpop.permute.xlu0 %243
  %245 = vrot.lane.b32.xlu0 %v242, 91
  %v246 = vpop.permute.xlu0 %245
  %v247 = vrot.slane %v244, 4
  %v248 = vrot.slane %v246, 4
  %v249 = vsel %vm62, %v247, %v248
  %vm250 = vcmask 744448
  %v251 = vsel %vm250, %v244, %v249
  %v252 = vsel %vm250, %v246, %v248
  %255 = vst [vmem:[#allocation2 + $0x24] sm:$0xcc] %v251
  %256 = vst [vmem:[#allocation2 + $0x2c] sm:$0xc] %v252
  %v257 = vld [vmem:[%s0] sm:$0xff]
  %v259 = vcombine.high %v257, %v257
  %v261 = vunpack.c.l.s4 1983009808
  %v262 = vunpack.c.0.s8 %v261
  %v263 = vlaneseq
  %v264 = vshrl.u32 %v263, 7
  %v265 = vsub.s32 %v262, %v264
  %v266 = vrot.slane %v257, %v265
  %v268 = vunpack.c.l.s4 1983009808
  %v269 = vunpack.c.0.s8 %v268
  %v270 = vlaneseq
  %v271 = vshrl.u32 %v270, 7
  %v272 = vsub.s32 %v269, %v271
  %v273 = vrot.slane %v259, %v272
  %274 = vrot.lane.b32.xlu0 %v266, 90
  %v275 = vpop.permute.xlu0 %274
  %276 = vrot.lane.b32.xlu0 %v273, 90
  %v277 = vpop.permute.xlu0 %276
  %v278 = vrot.slane %v275, 4
  %v279 = vrot.slane %v277, 4
  %v280 = vsel %vm62, %v278, %v279
  %vm281 = vcmask 736256
  %v282 = vsel %vm281, %v275, %v280
  %v283 = vsel %vm281, %v277, %v279
  %286 = vst [vmem:[#allocation2 + $0x30] sm:$0x33] %v282
  %287 = vst [vmem:[#allocation2 + $0x38] sm:$0x3] %v283
  %v288 = vld [vmem:[%s1] sm:$0xf]
  %v289 = vld [vmem:[#allocation2] sm:$0xff]
  %v290 = vld [vmem:[#allocation2 + $0x8] sm:$0xf]
  %v291 = vld [vmem:[#allocation2 + $0xc] sm:$0xff]
  %v292 = vld [vmem:[#allocation2 + $0x14] sm:$0xf]
  %v293 = vld [vmem:[#allocation2 + $0x18] sm:$0xff]
  %v294 = vld [vmem:[#allocation2 + $0x20] sm:$0xf]
  %v295 = vld [vmem:[#allocation2 + $0x24] sm:$0xff]
  %v296 = vld [vmem:[#allocation2 + $0x2c] sm:$0xf]
  %v297 = vld [vmem:[#allocation2 + $0x30] sm:$0x33]
  %v298 = vld [vmem:[#allocation2 + $0x38] sm:$0x3]
  %v309 = vunpack.c.l.b16 %v289
  %v310 = vunpack.c.h.b16 %v289
  %v311 = vunpack.c.l.b16 %v290
  %v312 = vunpack.c.l.b16 %v291
  %v313 = vunpack.c.h.b16 %v291
  %v314 = vunpack.c.l.b16 %v292
  %v315 = vunpack.c.l.b16 %v293
  %v316 = vunpack.c.h.b16 %v293
  %v317 = vunpack.c.l.b16 %v294
  %v318 = vunpack.c.l.b16 %v295
  %v319 = vunpack.c.h.b16 %v295
  %v320 = vunpack.c.l.b16 %v296
  %v321 = vunpack.c.l.b16 %v297
  %v322 = vunpack.c.h.b16 %v297
  %v323 = vunpack.c.l.b16 %v298
  %v324 = vpack.c.b16 %v312, %v309
  %v325 = vpack.c.b16 %v313, %v310
  %v326 = vpack.c.b16 %v314, %v311
  %v327 = vpack.c.b16 %v318, %v315
  %v328 = vpack.c.b16 %v319, %v316
  %v329 = vpack.c.b16 %v320, %v317
  %v330 = vpack.c.b16 %v321, %v321
  %v331 = vpack.c.b16 %v322, %v322
  %v332 = vpack.c.b16 %v323, %v323
  %vm339 = vcmask 293888
  %v341 = vsel %vm339, %v288, 0
  %vm343 = vcmask 1041408
  %v345 = vsel %vm343, %v330, 0
  %v348 = vsel %vm343, %v331, 0
  %v351 = vsel %vm343, %v332, 0
  %353 = vmatprep.subr.bf16.mxu0 %v325
  %354 = vmatpush1.bf16.msra.mxu0 %v324
  %355 = vmatprep.subr.bf16.mxu0 %v328
  %356 = vmatpush1.bf16.msra.mxu0 %v327
  %357 = vmatprep.subr.bf16.mxu0 %v348
  %358 = vmatpush1.bf16.msra.mxu0 %v345
  %359 = vmatprep.subr.bf16.mxu0 0
  %360 = vmatpush1.bf16.msra.mxu0 0
  %361 = vmatprep.subr.bf16.mxu0 0
  %362 = vmatpush1.bf16.msra.mxu0 0
  %363 = vmatprep.subr.bf16.mxu0 0
  %364 = vmatpush1.bf16.msra.mxu0 0
  %365 = vmatprep.subr.bf16.mxu0 0
  %366 = vmatpush1.bf16.msra.mxu0 0
  %367 = vmatprep.subr.bf16.mxu0 0
  %368 = vmatpush1.bf16.msra.mxu0 0
  %369 = vmatprep.subr.bf16.mxu0 0
  %370 = vmatpush1.bf16.msra.mxu0 0
  %371 = vmatprep.subr.bf16.mxu0 0
  %372 = vmatpush1.bf16.msra.mxu0 0
  %373 = vmatprep.subr.bf16.mxu0 0
  %374 = vmatpush1.bf16.msra.mxu0 0
  %375 = vmatprep.subr.bf16.mxu0 0
  %376 = vmatpush1.bf16.msra.mxu0 0
  %377 = vmatprep.subr.bf16.mxu0 0
  %378 = vmatpush1.bf16.msra.mxu0 0
  %379 = vmatprep.subr.bf16.mxu0 0
  %380 = vmatpush1.bf16.msra.mxu0 0
  %381 = vmatprep.subr.bf16.mxu0 0
  %382 = vmatpush1.bf16.msra.mxu0 0
  %383 = vmatprep.subr.bf16.mxu0 0
  %384 = vmatpush1.bf16.msra.mxu0 0
  %385 = vmatprep.mubr.bf16.mxu0 0
  %386 = vmatmul.mubr.bf16.gmra.mrb[0].mxu0 %v341
  %v387 = vpop.f32.mrb[0].mxu0
  %v388 = vadd.f32 0.0, %v387
  %v389 = vpop.f32.mrb[0].mxu0
  %v390 = vadd.f32 0.0, %v389
  %v391 = vpop.f32.mrb[0].mxu0
  %v392 = vpop.f32.mrb[0].mxu0
  %393 = vdwg.mxu0
  %394 = vmatprep.subr.bf16.mxu0 0
  %395 = vmatpush1.bf16.msra.mxu0 %v326
  %396 = vmatprep.subr.bf16.mxu0 0
  %397 = vmatpush1.bf16.msra.mxu0 %v329
  %398 = vmatprep.subr.bf16.mxu0 0
  %399 = vmatpush1.bf16.msra.mxu0 %v351
  %400 = vmatprep.subr.bf16.mxu0 0
  %401 = vmatpush1.bf16.msra.mxu0 0
  %402 = vmatprep.subr.bf16.mxu0 0
  %403 = vmatpush1.bf16.msra.mxu0 0
  %404 = vmatprep.subr.bf16.mxu0 0
  %405 = vmatpush1.bf16.msra.mxu0 0
  %406 = vmatprep.subr.bf16.mxu0 0
  %407 = vmatpush1.bf16.msra.mxu0 0
  %408 = vmatprep.subr.bf16.mxu0 0
  %409 = vmatpush1.bf16.msra.mxu0 0
  %410 = vmatprep.subr.bf16.mxu0 0
  %411 = vmatpush1.bf16.msra.mxu0 0
  %412 = vmatprep.subr.bf16.mxu0 0
  %413 = vmatpush1.bf16.msra.mxu0 0
  %414 = vmatprep.subr.bf16.mxu0 0
  %415 = vmatpush1.bf16.msra.mxu0 0
  %416 = vmatprep.subr.bf16.mxu0 0
  %417 = vmatpush1.bf16.msra.mxu0 0
  %418 = vmatprep.subr.bf16.mxu0 0
  %419 = vmatpush1.bf16.msra.mxu0 0
  %420 = vmatprep.subr.bf16.mxu0 0
  %421 = vmatpush1.bf16.msra.mxu0 0
  %422 = vmatprep.subr.bf16.mxu0 0
  %423 = vmatpush1.bf16.msra.mxu0 0
  %424 = vmatprep.subr.bf16.mxu0 0
  %425 = vmatpush1.bf16.msra.mxu0 0
  %426 = vmatprep.mubr.bf16.mxu0 0
  %427 = vmatmul.mubr.bf16.gmra.mrb[0].mxu0 %v341
  %v428 = vpop.f32.mrb[0].mxu0
  %v429 = vadd.f32 0.0, %v428
  %v430 = vpop.f32.mrb[0].mxu0
  %v431 = vpop.f32.mrb[0].mxu0
  %v432 = vpop.f32.mrb[0].mxu0
  %433 = vdwg.mxu0
  %v435 = vlaneseq
  %v436 = vshrl.u32 %v435, 7
  %v437 = vsub.s32 0, %v436
  %v438 = vrot.slane %v17, %v437
  %v439 = vlaneseq
  %v440 = vshrl.u32 %v439, 7
  %v441 = vsub.s32 1, %v440
  %v442 = vrot.slane %v17, %v441
  %v443 = vlaneseq
  %v444 = vshrl.u32 %v443, 7
  %v445 = vsub.s32 2, %v444
  %v446 = vrot.slane %v17, %v445
  %v450 = vmul.f32 %v388, %v438
  %v451 = vmul.f32 %v390, %v442
  %v452 = vmul.f32 %v429, %v446
  %v453 = vadd.f32 %v450, %v451
  %v454 = vadd.f32 %v453, %v452
  %455 = vadd.xlane.f32.xlu0 %v454
  %v456 = vpop.xlane.xlu0 %455
  %v457 = vadd.f32 %v456, 0.0
  %v458 = vmul.f32 %v450, %v388
  %v459 = vmul.f32 %v451, %v390
  %v460 = vmul.f32 %v452, %v429
  %v461 = vadd.f32 %v458, %v459
  %v462 = vadd.f32 %v461, %v460
  %463 = vadd.xlane.f32.xlu0 %v462
  %v464 = vpop.xlane.xlu0 %463
  %v465 = vadd.f32 %v464, 0.0
  %s466 = scalar_lea.vmem %s0, 8
  %v467 = vld [vmem:[%s466] sm:$0x3f]
  %v469 = vcombine.high %v467, %v467
  %v471 = vunpack.c.l.s4 1983009808
  %v472 = vunpack.c.0.s8 %v471
  %v473 = vlaneseq
  %v474 = vshrl.u32 %v473, 7
  %v475 = vsub.s32 %v472, %v474
  %v476 = vrot.slane %v467, %v475
  %v478 = vunpack.c.l.s4 1983009808
  %v479 = vunpack.c.0.s8 %v478
  %v480 = vlaneseq
  %v481 = vshrl.u32 %v480, 7
  %v482 = vsub.s32 %v479, %v481
  %v483 = vrot.slane %v469, %v482
  %486 = vst [vmem:[#allocation2] sm:$0x33] %v476
  %487 = vst [vmem:[#allocation2 + $0x8] sm:$0x3] %v483
  %v488 = vld [vmem:[%s466] sm:$0xff]
  %v490 = vcombine.low %v488, %v488
  %v492 = vunpack.c.l.s4 1983009808
  %v493 = vunpack.c.0.s8 %v492
  %v494 = vlaneseq
  %v495 = vshrl.u32 %v494, 7
  %v496 = vsub.s32 %v493, %v495
  %v497 = vrot.slane %v490, %v496
  %v499 = vunpack.c.l.s4 1983009808
  %v500 = vunpack.c.0.s8 %v499
  %v501 = vlaneseq
  %v502 = vshrl.u32 %v501, 7
  %v503 = vsub.s32 %v500, %v502
  %v504 = vrot.slane %v488, %v503
  %505 = vrot.lane.b32.xlu0 %v497, 127
  %v506 = vpop.permute.xlu0 %505
  %507 = vrot.lane.b32.xlu0 %v504, 127
  %v508 = vpop.permute.xlu0 %507
  %v509 = vrot.slane %v506, 4
  %v510 = vrot.slane %v508, 4
  %v511 = vsel %vm62, %v509, %v510
  %v512 = vsel %vm64, %v506, %v511
  %v513 = vsel %vm64, %v508, %v510
  %516 = vst [vmem:[#allocation2] sm:$0xcc] %v512
  %517 = vst [vmem:[#allocation2 + $0x8] sm:$0xc] %v513
  %v518 = vld [vmem:[%s466] sm:$0xff]
  %v520 = vcombine.high %v518, %v518
  %v522 = vunpack.c.l.s4 1983009808
  %v523 = vunpack.c.0.s8 %v522
  %v524 = vlaneseq
  %v525 = vshrl.u32 %v524, 7
  %v526 = vsub.s32 %v523, %v525
  %v527 = vrot.slane %v518, %v526
  %v529 = vunpack.c.l.s4 1983009808
  %v530 = vunpack.c.0.s8 %v529
  %v531 = vlaneseq
  %v532 = vshrl.u32 %v531, 7
  %v533 = vsub.s32 %v530, %v532
  %v534 = vrot.slane %v520, %v533
  %535 = vrot.lane.b32.xlu0 %v527, 126
  %v536 = vpop.permute.xlu0 %535
  %537 = vrot.lane.b32.xlu0 %v534, 126
  %v538 = vpop.permute.xlu0 %537
  %v539 = vrot.slane %v536, 4
  %v540 = vrot.slane %v538, 4
  %v541 = vsel %vm62, %v539, %v540
  %v542 = vsel %vm95, %v536, %v541
  %v543 = vsel %vm95, %v538, %v540
  %546 = vst [vmem:[#allocation2 + $0xc] sm:$0x33] %v542
  %547 = vst [vmem:[#allocation2 + $0x14] sm:$0x3] %v543
  %v548 = vld [vmem:[%s466] sm:$0xff]
  %v550 = vcombine.low %v548, %v548
  %v552 = vunpack.c.l.s4 1983009808
  %v553 = vunpack.c.0.s8 %v552
  %v554 = vlaneseq
  %v555 = vshrl.u32 %v554, 7
  %v556 = vsub.s32 %v553, %v555
  %v557 = vrot.slane %v550, %v556
  %v559 = vunpack.c.l.s4 1983009808
  %v560 = vunpack.c.0.s8 %v559
  %v561 = vlaneseq
  %v562 = vshrl.u32 %v561, 7
  %v563 = vsub.s32 %v560, %v562
  %v564 = vrot.slane %v548, %v563
  %565 = vrot.lane.b32.xlu0 %v557, 110
  %v566 = vpop.permute.xlu0 %565
  %567 = vrot.lane.b32.xlu0 %v564, 110
  %v568 = vpop.permute.xlu0 %567
  %v569 = vrot.slane %v566, 4
  %v570 = vrot.slane %v568, 4
  %v571 = vsel %vm62, %v569, %v570
  %v572 = vsel %vm126, %v566, %v571
  %v573 = vsel %vm126, %v568, %v570
  %576 = vst [vmem:[#allocation2 + $0xc] sm:$0xcc] %v572
  %577 = vst [vmem:[#allocation2 + $0x14] sm:$0xc] %v573
  %v578 = vld [vmem:[%s466] sm:$0xff]
  %v580 = vcombine.high %v578, %v578
  %v582 = vunpack.c.l.s4 1983009808
  %v583 = vunpack.c.0.s8 %v582
  %v584 = vlaneseq
  %v585 = vshrl.u32 %v584, 7
  %v586 = vsub.s32 %v583, %v585
  %v587 = vrot.slane %v578, %v586
  %v589 = vunpack.c.l.s4 1983009808
  %v590 = vunpack.c.0.s8 %v589
  %v591 = vlaneseq
  %v592 = vshrl.u32 %v591, 7
  %v593 = vsub.s32 %v590, %v592
  %v594 = vrot.slane %v580, %v593
  %595 = vrot.lane.b32.xlu0 %v587, 109
  %v596 = vpop.permute.xlu0 %595
  %597 = vrot.lane.b32.xlu0 %v594, 109
  %v598 = vpop.permute.xlu0 %597
  %v599 = vrot.slane %v596, 4
  %v600 = vrot.slane %v598, 4
  %v601 = vsel %vm62, %v599, %v600
  %v602 = vsel %vm157, %v596, %v601
  %v603 = vsel %vm157, %v598, %v600
  %606 = vst [vmem:[#allocation2 + $0x18] sm:$0x33] %v602
  %607 = vst [vmem:[#allocation2 + $0x20] sm:$0x3] %v603
  %v608 = vld [vmem:[%s466] sm:$0xff]
  %v610 = vcombine.low %v608, %v608
  %v612 = vunpack.c.l.s4 1983009808
  %v613 = vunpack.c.0.s8 %v612
  %v614 = vlaneseq
  %v615 = vshrl.u32 %v614, 7
  %v616 = vsub.s32 %v613, %v615
  %v617 = vrot.slane %v610, %v616
  %v619 = vunpack.c.l.s4 1983009808
  %v620 = vunpack.c.0.s8 %v619
  %v621 = vlaneseq
  %v622 = vshrl.u32 %v621, 7
  %v623 = vsub.s32 %v620, %v622
  %v624 = vrot.slane %v608, %v623
  %625 = vrot.lane.b32.xlu0 %v617, 108
  %v626 = vpop.permute.xlu0 %625
  %627 = vrot.lane.b32.xlu0 %v624, 108
  %v628 = vpop.permute.xlu0 %627
  %v629 = vrot.slane %v626, 4
  %v630 = vrot.slane %v628, 4
  %v631 = vsel %vm62, %v629, %v630
  %v632 = vsel %vm188, %v626, %v631
  %v633 = vsel %vm188, %v628, %v630
  %636 = vst [vmem:[#allocation2 + $0x18] sm:$0xcc] %v632
  %637 = vst [vmem:[#allocation2 + $0x20] sm:$0xc] %v633
  %v638 = vld [vmem:[%s466] sm:$0xff]
  %v640 = vcombine.high %v638, %v638
  %v642 = vunpack.c.l.s4 1983009808
  %v643 = vunpack.c.0.s8 %v642
  %v644 = vlaneseq
  %v645 = vshrl.u32 %v644, 7
  %v646 = vsub.s32 %v643, %v645
  %v647 = vrot.slane %v638, %v646
  %v649 = vunpack.c.l.s4 1983009808
  %v650 = vunpack.c.0.s8 %v649
  %v651 = vlaneseq
  %v652 = vshrl.u32 %v651, 7
  %v653 = vsub.s32 %v650, %v652
  %v654 = vrot.slane %v640, %v653
  %655 = vrot.lane.b32.xlu0 %v647, 92
  %v656 = vpop.permute.xlu0 %655
  %657 = vrot.lane.b32.xlu0 %v654, 92
  %v658 = vpop.permute.xlu0 %657
  %v659 = vrot.slane %v656, 4
  %v660 = vrot.slane %v658, 4
  %v661 = vsel %vm62, %v659, %v660
  %v662 = vsel %vm219, %v656, %v661
  %v663 = vsel %vm219, %v658, %v660
  %666 = vst [vmem:[#allocation2 + $0x24] sm:$0x33] %v662
  %667 = vst [vmem:[#allocation2 + $0x2c] sm:$0x3] %v663
  %v668 = vld [vmem:[%s466] sm:$0xff]
  %v670 = vcombine.low %v668, %v668
  %v672 = vunpack.c.l.s4 1983009808
  %v673 = vunpack.c.0.s8 %v672
  %v674 = vlaneseq
  %v675 = vshrl.u32 %v674, 7
  %v676 = vsub.s32 %v673, %v675
  %v677 = vrot.slane %v670, %v676
  %v679 = vunpack.c.l.s4 1983009808
  %v680 = vunpack.c.0.s8 %v679
  %v681 = vlaneseq
  %v682 = vshrl.u32 %v681, 7
  %v683 = vsub.s32 %v680, %v682
  %v684 = vrot.slane %v668, %v683
  %685 = vrot.lane.b32.xlu0 %v677, 91
  %v686 = vpop.permute.xlu0 %685
  %687 = vrot.lane.b32.xlu0 %v684, 91
  %v688 = vpop.permute.xlu0 %687
  %v689 = vrot.slane %v686, 4
  %v690 = vrot.slane %v688, 4
  %v691 = vsel %vm62, %v689, %v690
  %v692 = vsel %vm250, %v686, %v691
  %v693 = vsel %vm250, %v688, %v690
  %696 = vst [vmem:[#allocation2 + $0x24] sm:$0xcc] %v692
  %697 = vst [vmem:[#allocation2 + $0x2c] sm:$0xc] %v693
  %v698 = vld [vmem:[%s466] sm:$0xff]
  %v700 = vcombine.high %v698, %v698
  %v702 = vunpack.c.l.s4 1983009808
  %v703 = vunpack.c.0.s8 %v702
  %v704 = vlaneseq
  %v705 = vshrl.u32 %v704, 7
  %v706 = vsub.s32 %v703, %v705
  %v707 = vrot.slane %v698, %v706
  %v709 = vunpack.c.l.s4 1983009808
  %v710 = vunpack.c.0.s8 %v709
  %v711 = vlaneseq
  %v712 = vshrl.u32 %v711, 7
  %v713 = vsub.s32 %v710, %v712
  %v714 = vrot.slane %v700, %v713
  %715 = vrot.lane.b32.xlu0 %v707, 90
  %v716 = vpop.permute.xlu0 %715
  %717 = vrot.lane.b32.xlu0 %v714, 90
  %v718 = vpop.permute.xlu0 %717
  %v719 = vrot.slane %v716, 4
  %v720 = vrot.slane %v718, 4
  %v721 = vsel %vm62, %v719, %v720
  %v722 = vsel %vm281, %v716, %v721
  %v723 = vsel %vm281, %v718, %v720
  %726 = vst [vmem:[#allocation2 + $0x30] sm:$0x33] %v722
  %727 = vst [vmem:[#allocation2 + $0x38] sm:$0x3] %v723
  %v728 = vld [vmem:[%s1] sm:$0xf]
  %v729 = vld [vmem:[#allocation2] sm:$0xff]
  %v730 = vld [vmem:[#allocation2 + $0x8] sm:$0xf]
  %v731 = vld [vmem:[#allocation2 + $0xc] sm:$0xff]
  %v732 = vld [vmem:[#allocation2 + $0x14] sm:$0xf]
  %v733 = vld [vmem:[#allocation2 + $0x18] sm:$0xff]
  %v734 = vld [vmem:[#allocation2 + $0x20] sm:$0xf]
  %v735 = vld [vmem:[#allocation2 + $0x24] sm:$0xff]
  %v736 = vld [vmem:[#allocation2 + $0x2c] sm:$0xf]
  %v737 = vld [vmem:[#allocation2 + $0x30] sm:$0x33]
  %v738 = vld [vmem:[#allocation2 + $0x38] sm:$0x3]
  %v749 = vunpack.c.l.b16 %v729
  %v750 = vunpack.c.h.b16 %v729
  %v751 = vunpack.c.l.b16 %v730
  %v752 = vunpack.c.l.b16 %v731
  %v753 = vunpack.c.h.b16 %v731
  %v754 = vunpack.c.l.b16 %v732
  %v755 = vunpack.c.l.b16 %v733
  %v756 = vunpack.c.h.b16 %v733
  %v757 = vunpack.c.l.b16 %v734
  %v758 = vunpack.c.l.b16 %v735
  %v759 = vunpack.c.h.b16 %v735
  %v760 = vunpack.c.l.b16 %v736
  %v761 = vunpack.c.l.b16 %v737
  %v762 = vunpack.c.h.b16 %v737
  %v763 = vunpack.c.l.b16 %v738
  %v764 = vpack.c.b16 %v752, %v749
  %v765 = vpack.c.b16 %v753, %v750
  %v766 = vpack.c.b16 %v754, %v751
  %v767 = vpack.c.b16 %v758, %v755
  %v768 = vpack.c.b16 %v759, %v756
  %v769 = vpack.c.b16 %v760, %v757
  %v770 = vpack.c.b16 %v761, %v761
  %v771 = vpack.c.b16 %v762, %v762
  %v772 = vpack.c.b16 %v763, %v763
  %v780 = vsel %vm339, %v728, 0
  %v783 = vsel %vm343, %v770, 0
  %v786 = vsel %vm343, %v771, 0
  %v789 = vsel %vm343, %v772, 0
  %791 = vmatprep.subr.bf16.mxu0 %v765
  %792 = vmatpush1.bf16.msra.mxu0 %v764
  %793 = vmatprep.subr.bf16.mxu0 %v768
  %794 = vmatpush1.bf16.msra.mxu0 %v767
  %795 = vmatprep.subr.bf16.mxu0 %v786
  %796 = vmatpush1.bf16.msra.mxu0 %v783
  %797 = vmatprep.subr.bf16.mxu0 0
  %798 = vmatpush1.bf16.msra.mxu0 0
  %799 = vmatprep.subr.bf16.mxu0 0
  %800 = vmatpush1.bf16.msra.mxu0 0
  %801 = vmatprep.subr.bf16.mxu0 0
  %802 = vmatpush1.bf16.msra.mxu0 0
  %803 = vmatprep.subr.bf16.mxu0 0
  %804 = vmatpush1.bf16.msra.mxu0 0
  %805 = vmatprep.subr.bf16.mxu0 0
  %806 = vmatpush1.bf16.msra.mxu0 0
  %807 = vmatprep.subr.bf16.mxu0 0
  %808 = vmatpush1.bf16.msra.mxu0 0
  %809 = vmatprep.subr.bf16.mxu0 0
  %810 = vmatpush1.bf16.msra.mxu0 0
  %811 = vmatprep.subr.bf16.mxu0 0
  %812 = vmatpush1.bf16.msra.mxu0 0
  %813 = vmatprep.subr.bf16.mxu0 0
  %814 = vmatpush1.bf16.msra.mxu0 0
  %815 = vmatprep.subr.bf16.mxu0 0
  %816 = vmatpush1.bf16.msra.mxu0 0
  %817 = vmatprep.subr.bf16.mxu0 0
  %818 = vmatpush1.bf16.msra.mxu0 0
  %819 = vmatprep.subr.bf16.mxu0 0
  %820 = vmatpush1.bf16.msra.mxu0 0
  %821 = vmatprep.subr.bf16.mxu0 0
  %822 = vmatpush1.bf16.msra.mxu0 0
  %823 = vmatprep.mubr.bf16.mxu0 0
  %824 = vmatmul.mubr.bf16.gmra.mrb[0].mxu0 %v780
  %v825 = vpop.f32.mrb[0].mxu0
  %v826 = vadd.f32 0.0, %v825
  %v827 = vpop.f32.mrb[0].mxu0
  %v828 = vadd.f32 0.0, %v827
  %v829 = vpop.f32.mrb[0].mxu0
  %v830 = vpop.f32.mrb[0].mxu0
  %831 = vdwg.mxu0
  %832 = vmatprep.subr.bf16.mxu0 0
  %833 = vmatpush1.bf16.msra.mxu0 %v766
  %834 = vmatprep.subr.bf16.mxu0 0
  %835 = vmatpush1.bf16.msra.mxu0 %v769
  %836 = vmatprep.subr.bf16.mxu0 0
  %837 = vmatpush1.bf16.msra.mxu0 %v789
  %838 = vmatprep.subr.bf16.mxu0 0
  %839 = vmatpush1.bf16.msra.mxu0 0
  %840 = vmatprep.subr.bf16.mxu0 0
  %841 = vmatpush1.bf16.msra.mxu0 0
  %842 = vmatprep.subr.bf16.mxu0 0
  %843 = vmatpush1.bf16.msra.mxu0 0
  %844 = vmatprep.subr.bf16.mxu0 0
  %845 = vmatpush1.bf16.msra.mxu0 0
  %846 = vmatprep.subr.bf16.mxu0 0
  %847 = vmatpush1.bf16.msra.mxu0 0
  %848 = vmatprep.subr.bf16.mxu0 0
  %849 = vmatpush1.bf16.msra.mxu0 0
  %850 = vmatprep.subr.bf16.mxu0 0
  %851 = vmatpush1.bf16.msra.mxu0 0
  %852 = vmatprep.subr.bf16.mxu0 0
  %853 = vmatpush1.bf16.msra.mxu0 0
  %854 = vmatprep.subr.bf16.mxu0 0
  %855 = vmatpush1.bf16.msra.mxu0 0
  %856 = vmatprep.subr.bf16.mxu0 0
  %857 = vmatpush1.bf16.msra.mxu0 0
  %858 = vmatprep.subr.bf16.mxu0 0
  %859 = vmatpush1.bf16.msra.mxu0 0
  %860 = vmatprep.subr.bf16.mxu0 0
  %861 = vmatpush1.bf16.msra.mxu0 0
  %862 = vmatprep.subr.bf16.mxu0 0
  %863 = vmatpush1.bf16.msra.mxu0 0
  %864 = vmatprep.mubr.bf16.mxu0 0
  %865 = vmatmul.mubr.bf16.gmra.mrb[0].mxu0 %v780
  %v866 = vpop.f32.mrb[0].mxu0
  %v867 = vadd.f32 0.0, %v866
  %v868 = vpop.f32.mrb[0].mxu0
  %v869 = vpop.f32.mrb[0].mxu0
  %v870 = vpop.f32.mrb[0].mxu0
  %871 = vdwg.mxu0
  %v872 = vmul.f32 %v826, %v438
  %v873 = vmul.f32 %v828, %v442
  %v874 = vmul.f32 %v867, %v446
  %v875 = vadd.f32 %v872, %v873
  %v876 = vadd.f32 %v875, %v874
  %877 = vadd.xlane.f32.xlu0 %v876
  %v878 = vpop.xlane.xlu0 %877
  %v879 = vadd.f32 %v457, %v878
  %v880 = vmul.f32 %v872, %v826
  %v881 = vmul.f32 %v873, %v828
  %v882 = vmul.f32 %v874, %v867
  %v883 = vadd.f32 %v880, %v881
  %v884 = vadd.f32 %v883, %v882
  %885 = vadd.xlane.f32.xlu0 %v884
  %v886 = vpop.xlane.xlu0 %885
  %v887 = vadd.f32 %v465, %v886
  %vm888 = vcmask 7168
  %889 = vst.msk [vmem:[%s3] sm:$0xff] %vm888, %v879
  %890 = vst.msk [vmem:[%s4] sm:$0xff] %vm888, %v887
  // Predicated region
  $region14: #{conv_block_forward.2} parent=0 // pred_check
    _
  $region15: #{conv_block_forward.2} parent=0 // pred_check_branch
    %892 = sbr.rel (0) target = $region17
  $region16: #{conv_block_forward.2} parent=0 // pred_region
    _
  $region17: #{conv_block_forward.2} parent=0 // pred_fallthru
    _
  // Predicated region
  $region18: #{conv_block_forward.2} parent=0 // pred_check
    _
  $region19: #{conv_block_forward.2} parent=0 // pred_check_branch
    %894 = sbr.rel (0) target = $region21
  $region20: #{conv_block_forward.2} parent=0 // pred_region
    _
  $region21: #{conv_block_forward.2} parent=0 // pred_fallthru
    _
  // Predicated region
  $region22: #{conv_block_forward.2} parent=0 // pred_check
    _
  $region23: #{conv_block_forward.2} parent=0 // pred_check_branch
    %896 = sbr.rel (0) target = $region25
  $region24: #{conv_block_forward.2} parent=0 // pred_region
    _
  $region25: #{conv_block_forward.2} parent=0 // pred_fallthru
    _
  // Predicated region
  $region26: #{conv_block_forward.2} parent=0 // pred_check
    _
  $region27: #{conv_block_forward.2} parent=0 // pred_check_branch
    %898 = sbr.rel (0) target = $region29
  $region28: #{conv_block_forward.2} parent=0 // pred_region
    _
  $region29: #{conv_block_forward.2} parent=0 // pred_fallthru
    _

// kernel: conv_block_forward.3
$region0: #{conv_block_forward.3}
  #allocation0 [shape = 'u32[]', space=smem, size = 0x4, offset = 0x4, fixed_abs, tag = 'smem constant byte address 0x4 - core index']
  #allocation1 [shape = 'u32[144,128]{1,0:T(1,128)}', space=vmem, size = 0x12000, scoped, tag = 'internal scratch']
  #allocation2 [shape = 'bf16[36,384]{1,0:T(8,128)(2,1)}', space=vmem, size = 0x7800, scoped, tag = 'scratch operand']
  #allocation3 [shape = 'f32[8,512]{1,0:T(8,128)}', space=vmem, size = 0x4000, scoped, tag = 'scratch operand']
  %s0 = inlined_call_operand.vmem [shape: bf16[2,4,512], index: 0, kind: input, shape index: {}]
  %s1 = inlined_call_operand.vmem [shape: bf16[8,36], index: 1, kind: input, shape index: {}]
  %s2 = inlined_call_operand.vmem [shape: f32[1,8,1], index: 2, kind: input, shape index: {}]
  %s3 = inlined_call_operand.vmem [shape: f32[1,8,1], index: 3, kind: input, shape index: {}]
  %s4 = inlined_call_operand.vmem [shape: f32[8,1], index: 4, kind: input, shape index: {}]
  %s5 = inlined_call_operand.vmem [shape: f32[8,1], index: 5, kind: input, shape index: {}]
  %s6 = inlined_call_operand.vmem [shape: f32[384,64], index: 6, kind: input, shape index: {}]
  %s7 = inlined_call_operand.vmem [shape: f32[1,8,128], index: 7, kind: output, shape index: {}]
  %s8 = sld [smem:[#allocation0]]
  $region38: #{conv_block_forward.3} parent=0
    _
  %s10 = ssub.s32 1, %s8
  %s11 = scalar_select 0, %s10, %s8
  // Predicated region
  $region2: #{conv_block_forward.3} parent=0 // pred_check
    _
  $region3: #{conv_block_forward.3} parent=0 // pred_check_branch
    %13 = sbr.rel (0) target = $region5
  $region4: #{conv_block_forward.3} parent=0 // pred_region
    _
  $region5: #{conv_block_forward.3} parent=0 // pred_fallthru
    _
  // Predicated region
  $region6: #{conv_block_forward.3} parent=0 // pred_check
    _
  $region7: #{conv_block_forward.3} parent=0 // pred_check_branch
    %15 = sbr.rel (0) target = $region9
  $region8: #{conv_block_forward.3} parent=0 // pred_region
    _
  $region9: #{conv_block_forward.3} parent=0 // pred_fallthru
    _
  // Predicated region
  $region10: #{conv_block_forward.3} parent=0 // pred_check
    _
  $region11: #{conv_block_forward.3} parent=0 // pred_check_branch
    %17 = sbr.rel (0) target = $region13
  $region12: #{conv_block_forward.3} parent=0 // pred_region
    _
  $region13: #{conv_block_forward.3} parent=0 // pred_fallthru
    _
  // Predicated region
  $region14: #{conv_block_forward.3} parent=0 // pred_check
    _
  $region15: #{conv_block_forward.3} parent=0 // pred_check_branch
    %19 = sbr.rel (0) target = $region17
  $region16: #{conv_block_forward.3} parent=0 // pred_region
    _
  $region17: #{conv_block_forward.3} parent=0 // pred_fallthru
    _
  // Predicated region
  $region18: #{conv_block_forward.3} parent=0 // pred_check
    _
  $region19: #{conv_block_forward.3} parent=0 // pred_check_branch
    %21 = sbr.rel (0) target = $region21
  $region20: #{conv_block_forward.3} parent=0 // pred_region
    _
  $region21: #{conv_block_forward.3} parent=0 // pred_fallthru
    _
  // Predicated region
  $region22: #{conv_block_forward.3} parent=0 // pred_check
    _
  $region23: #{conv_block_forward.3} parent=0 // pred_check_branch
    %23 = sbr.rel (0) target = $region25
  $region24: #{conv_block_forward.3} parent=0 // pred_region
    _
  $region25: #{conv_block_forward.3} parent=0 // pred_fallthru
    _
  // Predicated region
  $region26: #{conv_block_forward.3} parent=0 // pred_check
    _
  $region27: #{conv_block_forward.3} parent=0 // pred_check_branch
    %25 = sbr.rel (0) target = $region29
  $region28: #{conv_block_forward.3} parent=0 // pred_region
    _
  $region29: #{conv_block_forward.3} parent=0 // pred_fallthru
    _
  %v27 = vld [vmem:[%s2] sm:$0xff]
  %v28 = vadd.f32 %v27, 0.0
  %v29 = vmul.f32 %v28, 0.001953125
  %v30 = vld [vmem:[%s3] sm:$0xff]
  %v31 = vadd.f32 %v30, 0.0
  %v32 = vmul.f32 %v31, 0.001953125
  %v33 = vmul.f32 %v29, %v29
  %v34 = vsub.f32 %v32, %v33
  %v35 = vmax.f32 %v34, 0.0
  %v36 = vadd.f32 %v35, 1e-05
  %v37 = vrsqrt.pop %v36
  %v38 = vld [vmem:[%s4] sm:$0xff]
  %v39 = vmul.f32 %v38, %v37
  %v40 = vld [vmem:[%s5] sm:$0xff]
  %v41 = vmul.f32 %v29, %v39
  %v42 = vsub.f32 %v40, %v41
  %43 = vst [vmem:[#allocation3 + $0x18] sm:$0xff] 0.0
  %v44 = vld [vmem:[%s0] sm:$0x3f]
  %v46 = vcombine.high %v44, %v44
  %v48 = vunpack.c.l.s4 1983009808
  %v49 = vunpack.c.0.s8 %v48
  %v50 = vlaneseq
  %v51 = vshrl.u32 %v50, 7
  %v52 = vsub.s32 %v49, %v51
  %v53 = vrot.slane %v44, %v52
  %v55 = vunpack.c.l.s4 1983009808
  %v56 = vunpack.c.0.s8 %v55
  %v57 = vlaneseq
  %v58 = vshrl.u32 %v57, 7
  %v59 = vsub.s32 %v56, %v58
  %v60 = vrot.slane %v46, %v59
  %63 = vst [vmem:[#allocation2] sm:$0x33] %v53
  %64 = vst [vmem:[#allocation2 + $0x8] sm:$0x3] %v60
  %v65 = vld [vmem:[%s0] sm:$0xff]
  %v67 = vcombine.low %v65, %v65
  %v69 = vunpack.c.l.s4 1983009808
  %v70 = vunpack.c.0.s8 %v69
  %v71 = vlaneseq
  %v72 = vshrl.u32 %v71, 7
  %v73 = vsub.s32 %v70, %v72
  %v74 = vrot.slane %v67, %v73
  %v76 = vunpack.c.l.s4 1983009808
  %v77 = vunpack.c.0.s8 %v76
  %v78 = vlaneseq
  %v79 = vshrl.u32 %v78, 7
  %v80 = vsub.s32 %v77, %v79
  %v81 = vrot.slane %v65, %v80
  %82 = vrot.lane.b32.xlu0 %v74, 127
  %v83 = vpop.permute.xlu0 %82
  %84 = vrot.lane.b32.xlu0 %v81, 127
  %v85 = vpop.permute.xlu0 %84
  %v86 = vrot.slane %v83, 4
  %v87 = vrot.slane %v85, 4
  %vm88 = vcmask 1043456
  %v89 = vsel %vm88, %v86, %v87
  %vm90 = vcmask 1039360
  %v91 = vsel %vm90, %v83, %v89
  %v92 = vsel %vm90, %v85, %v87
  %95 = vst [vmem:[#allocation2] sm:$0xcc] %v91
  %96 = vst [vmem:[#allocation2 + $0x8] sm:$0xc] %v92
  %v97 = vld [vmem:[%s0] sm:$0xff]
  %v99 = vcombine.high %v97, %v97
  %v101 = vunpack.c.l.s4 1983009808
  %v102 = vunpack.c.0.s8 %v101
  %v103 = vlaneseq
  %v104 = vshrl.u32 %v103, 7
  %v105 = vsub.s32 %v102, %v104
  %v106 = vrot.slane %v97, %v105
  %v108 = vunpack.c.l.s4 1983009808
  %v109 = vunpack.c.0.s8 %v108
  %v110 = vlaneseq
  %v111 = vshrl.u32 %v110, 7
  %v112 = vsub.s32 %v109, %v111
  %v113 = vrot.slane %v99, %v112
  %114 = vrot.lane.b32.xlu0 %v106, 126
  %v115 = vpop.permute.xlu0 %114
  %116 = vrot.lane.b32.xlu0 %v113, 126
  %v117 = vpop.permute.xlu0 %116
  %v118 = vrot.slane %v115, 4
  %v119 = vrot.slane %v117, 4
  %v120 = vsel %vm88, %v118, %v119
  %vm121 = vcmask 1031168
  %v122 = vsel %vm121, %v115, %v120
  %v123 = vsel %vm121, %v117, %v119
  %126 = vst [vmem:[#allocation2 + $0xc] sm:$0x33] %v122
  %127 = vst [vmem:[#allocation2 + $0x14] sm:$0x3] %v123
  %v128 = vld [vmem:[%s0] sm:$0xff]
  %v130 = vcombine.low %v128, %v128
  %v132 = vunpack.c.l.s4 1983009808
  %v133 = vunpack.c.0.s8 %v132
  %v134 = vlaneseq
  %v135 = vshrl.u32 %v134, 7
  %v136 = vsub.s32 %v133, %v135
  %v137 = vrot.slane %v130, %v136
  %v139 = vunpack.c.l.s4 1983009808
  %v140 = vunpack.c.0.s8 %v139
  %v141 = vlaneseq
  %v142 = vshrl.u32 %v141, 7
  %v143 = vsub.s32 %v140, %v142
  %v144 = vrot.slane %v128, %v143
  %145 = vrot.lane.b32.xlu0 %v137, 110
  %v146 = vpop.permute.xlu0 %145
  %147 = vrot.lane.b32.xlu0 %v144, 110
  %v148 = vpop.permute.xlu0 %147
  %v149 = vrot.slane %v146, 4
  %v150 = vrot.slane %v148, 4
  %v151 = vsel %vm88, %v149, %v150
  %vm152 = vcmask 900096
  %v153 = vsel %vm152, %v146, %v151
  %v154 = vsel %vm152, %v148, %v150
  %157 = vst [vmem:[#allocation2 + $0xc] sm:$0xcc] %v153
  %158 = vst [vmem:[#allocation2 + $0x14] sm:$0xc] %v154
  %v159 = vld [vmem:[%s0] sm:$0xff]
  %v161 = vcombine.high %v159, %v159
  %v163 = vunpack.c.l.s4 1983009808
  %v164 = vunpack.c.0.s8 %v163
  %v165 = vlaneseq
  %v166 = vshrl.u32 %v165, 7
  %v167 = vsub.s32 %v164, %v166
  %v168 = vrot.slane %v159, %v167
  %v170 = vunpack.c.l.s4 1983009808
  %v171 = vunpack.c.0.s8 %v170
  %v172 = vlaneseq
  %v173 = vshrl.u32 %v172, 7
  %v174 = vsub.s32 %v171, %v173
  %v175 = vrot.slane %v161, %v174
  %176 = vrot.lane.b32.xlu0 %v168, 109
  %v177 = vpop.permute.xlu0 %176
  %178 = vrot.lane.b32.xlu0 %v175, 109
  %v179 = vpop.permute.xlu0 %178
  %v180 = vrot.slane %v177, 4
  %v181 = vrot.slane %v179, 4
  %v182 = vsel %vm88, %v180, %v181
  %vm183 = vcmask 891904
  %v184 = vsel %vm183, %v177, %v182
  %v185 = vsel %vm183, %v179, %v181
  %188 = vst [vmem:[#allocation2 + $0x18] sm:$0x33] %v184
  %189 = vst [vmem:[#allocation2 + $0x20] sm:$0x3] %v185
  %v190 = vld [vmem:[%s0] sm:$0xff]
  %v192 = vcombine.low %v190, %v190
  %v194 = vunpack.c.l.s4 1983009808
  %v195 = vunpack.c.0.s8 %v194
  %v196 = vlaneseq
  %v197 = vshrl.u32 %v196, 7
  %v198 = vsub.s32 %v195, %v197
  %v199 = vrot.slane %v192, %v198
  %v201 = vunpack.c.l.s4 1983009808
  %v202 = vunpack.c.0.s8 %v201
  %v203 = vlaneseq
  %v204 = vshrl.u32 %v203, 7
  %v205 = vsub.s32 %v202, %v204
  %v206 = vrot.slane %v190, %v205
  %207 = vrot.lane.b32.xlu0 %v199, 108
  %v208 = vpop.permute.xlu0 %207
  %209 = vrot.lane.b32.xlu0 %v206, 108
  %v210 = vpop.permute.xlu0 %209
  %v211 = vrot.slane %v208, 4
  %v212 = vrot.slane %v210, 4
  %v213 = vsel %vm88, %v211, %v212
  %vm214 = vcmask 883712
  %v215 = vsel %vm214, %v208, %v213
  %v216 = vsel %vm214, %v210, %v212
  %219 = vst [vmem:[#allocation2 + $0x18] sm:$0xcc] %v215
  %220 = vst [vmem:[#allocation2 + $0x20] sm:$0xc] %v216
  %v221 = vld [vmem:[%s0] sm:$0xff]
  %v223 = vcombine.high %v221, %v221
  %v225 = vunpack.c.l.s4 1983009808
  %v226 = vunpack.c.0.s8 %v225
  %v227 = vlaneseq
  %v228 = vshrl.u32 %v227, 7
  %v229 = vsub.s32 %v226, %v228
  %v230 = vrot.slane %v221, %v229
  %v232 = vunpack.c.l.s4 1983009808
  %v233 = vunpack.c.0.s8 %v232
  %v234 = vlaneseq
  %v235 = vshrl.u32 %v234, 7
  %v236 = vsub.s32 %v233, %v235
  %v237 = vrot.slane %v223, %v236
  %238 = vrot.lane.b32.xlu0 %v230, 92
  %v239 = vpop.permute.xlu0 %238
  %240 = vrot.lane.b32.xlu0 %v237, 92
  %v241 = vpop.permute.xlu0 %240
  %v242 = vrot.slane %v239, 4
  %v243 = vrot.slane %v241, 4
  %v244 = vsel %vm88, %v242, %v243
  %vm245 = vcmask 752640
  %v246 = vsel %vm245, %v239, %v244
  %v247 = vsel %vm245, %v241, %v243
  %250 = vst [vmem:[#allocation2 + $0x24] sm:$0x33] %v246
  %251 = vst [vmem:[#allocation2 + $0x2c] sm:$0x3] %v247
  %v252 = vld [vmem:[%s0] sm:$0xff]
  %v254 = vcombine.low %v252, %v252
  %v256 = vunpack.c.l.s4 1983009808
  %v257 = vunpack.c.0.s8 %v256
  %v258 = vlaneseq
  %v259 = vshrl.u32 %v258, 7
  %v260 = vsub.s32 %v257, %v259
  %v261 = vrot.slane %v254, %v260
  %v263 = vunpack.c.l.s4 1983009808
  %v264 = vunpack.c.0.s8 %v263
  %v265 = vlaneseq
  %v266 = vshrl.u32 %v265, 7
  %v267 = vsub.s32 %v264, %v266
  %v268 = vrot.slane %v252, %v267
  %269 = vrot.lane.b32.xlu0 %v261, 91
  %v270 = vpop.permute.xlu0 %269
  %271 = vrot.lane.b32.xlu0 %v268, 91
  %v272 = vpop.permute.xlu0 %271
  %v273 = vrot.slane %v270, 4
  %v274 = vrot.slane %v272, 4
  %v275 = vsel %vm88, %v273, %v274
  %vm276 = vcmask 744448
  %v277 = vsel %vm276, %v270, %v275
  %v278 = vsel %vm276, %v272, %v274
  %281 = vst [vmem:[#allocation2 + $0x24] sm:$0xcc] %v277
  %282 = vst [vmem:[#allocation2 + $0x2c] sm:$0xc] %v278
  %v283 = vld [vmem:[%s0] sm:$0xff]
  %v285 = vcombine.high %v283, %v283
  %v287 = vunpack.c.l.s4 1983009808
  %v288 = vunpack.c.0.s8 %v287
  %v289 = vlaneseq
  %v290 = vshrl.u32 %v289, 7
  %v291 = vsub.s32 %v288, %v290
  %v292 = vrot.slane %v283, %v291
  %v294 = vunpack.c.l.s4 1983009808
  %v295 = vunpack.c.0.s8 %v294
  %v296 = vlaneseq
  %v297 = vshrl.u32 %v296, 7
  %v298 = vsub.s32 %v295, %v297
  %v299 = vrot.slane %v285, %v298
  %300 = vrot.lane.b32.xlu0 %v292, 90
  %v301 = vpop.permute.xlu0 %300
  %302 = vrot.lane.b32.xlu0 %v299, 90
  %v303 = vpop.permute.xlu0 %302
  %v304 = vrot.slane %v301, 4
  %v305 = vrot.slane %v303, 4
  %v306 = vsel %vm88, %v304, %v305
  %vm307 = vcmask 736256
  %v308 = vsel %vm307, %v301, %v306
  %v309 = vsel %vm307, %v303, %v305
  %312 = vst [vmem:[#allocation2 + $0x30] sm:$0x33] %v308
  %313 = vst [vmem:[#allocation2 + $0x38] sm:$0x3] %v309
  %v314 = vld [vmem:[%s1] sm:$0xf]
  %v315 = vld [vmem:[#allocation2] sm:$0xff]
  %v316 = vld [vmem:[#allocation2 + $0x8] sm:$0xf]
  %v317 = vld [vmem:[#allocation2 + $0xc] sm:$0xff]
  %v318 = vld [vmem:[#allocation2 + $0x14] sm:$0xf]
  %v319 = vld [vmem:[#allocation2 + $0x18] sm:$0xff]
  %v320 = vld [vmem:[#allocation2 + $0x20] sm:$0xf]
  %v321 = vld [vmem:[#allocation2 + $0x24] sm:$0xff]
  %v322 = vld [vmem:[#allocation2 + $0x2c] sm:$0xf]
  %v323 = vld [vmem:[#allocation2 + $0x30] sm:$0x33]
  %v324 = vld [vmem:[#allocation2 + $0x38] sm:$0x3]
  %v335 = vunpack.c.l.b16 %v315
  %v336 = vunpack.c.h.b16 %v315
  %v337 = vunpack.c.l.b16 %v316
  %v338 = vunpack.c.l.b16 %v317
  %v339 = vunpack.c.h.b16 %v317
  %v340 = vunpack.c.l.b16 %v318
  %v341 = vunpack.c.l.b16 %v319
  %v342 = vunpack.c.h.b16 %v319
  %v343 = vunpack.c.l.b16 %v320
  %v344 = vunpack.c.l.b16 %v321
  %v345 = vunpack.c.h.b16 %v321
  %v346 = vunpack.c.l.b16 %v322
  %v347 = vunpack.c.l.b16 %v323
  %v348 = vunpack.c.h.b16 %v323
  %v349 = vunpack.c.l.b16 %v324
  %v350 = vpack.c.b16 %v338, %v335
  %v351 = vpack.c.b16 %v339, %v336
  %v352 = vpack.c.b16 %v340, %v337
  %v353 = vpack.c.b16 %v344, %v341
  %v354 = vpack.c.b16 %v345, %v342
  %v355 = vpack.c.b16 %v346, %v343
  %v356 = vpack.c.b16 %v347, %v347
  %v357 = vpack.c.b16 %v348, %v348
  %v358 = vpack.c.b16 %v349, %v349
  %vm365 = vcmask 293888
  %v367 = vsel %vm365, %v314, 0
  %vm369 = vcmask 1041408
  %v371 = vsel %vm369, %v356, 0
  %v374 = vsel %vm369, %v357, 0
  %v377 = vsel %vm369, %v358, 0
  %379 = vmatprep.subr.bf16.mxu0 %v351
  %380 = vmatpush1.bf16.msra.mxu0 %v350
  %381 = vmatprep.subr.bf16.mxu0 %v354
  %382 = vmatpush1.bf16.msra.mxu0 %v353
  %383 = vmatprep.subr.bf16.mxu0 %v374
  %384 = vmatpush1.bf16.msra.mxu0 %v371
  %385 = vmatprep.subr.bf16.mxu0 0
  %386 = vmatpush1.bf16.msra.mxu0 0
  %387 = vmatprep.subr.bf16.mxu0 0
  %388 = vmatpush1.bf16.msra.mxu0 0
  %389 = vmatprep.subr.bf16.mxu0 0
  %390 = vmatpush1.bf16.msra.mxu0 0
  %391 = vmatprep.subr.bf16.mxu0 0
  %392 = vmatpush1.bf16.msra.mxu0 0
  %393 = vmatprep.subr.bf16.mxu0 0
  %394 = vmatpush1.bf16.msra.mxu0 0
  %395 = vmatprep.subr.bf16.mxu0 0
  %396 = vmatpush1.bf16.msra.mxu0 0
  %397 = vmatprep.subr.bf16.mxu0 0
  %398 = vmatpush1.bf16.msra.mxu0 0
  %399 = vmatprep.subr.bf16.mxu0 0
  %400 = vmatpush1.bf16.msra.mxu0 0
  %401 = vmatprep.subr.bf16.mxu0 0
  %402 = vmatpush1.bf16.msra.mxu0 0
  %403 = vmatprep.subr.bf16.mxu0 0
  %404 = vmatpush1.bf16.msra.mxu0 0
  %405 = vmatprep.subr.bf16.mxu0 0
  %406 = vmatpush1.bf16.msra.mxu0 0
  %407 = vmatprep.subr.bf16.mxu0 0
  %408 = vmatpush1.bf16.msra.mxu0 0
  %409 = vmatprep.subr.bf16.mxu0 0
  %410 = vmatpush1.bf16.msra.mxu0 0
  %411 = vmatprep.mubr.bf16.mxu0 0
  %412 = vmatmul.mubr.bf16.gmra.mrb[0].mxu0 %v367
  %v413 = vpop.f32.mrb[0].mxu0
  %v414 = vadd.f32 0.0, %v413
  %v415 = vpop.f32.mrb[0].mxu0
  %v416 = vadd.f32 0.0, %v415
  %v417 = vpop.f32.mrb[0].mxu0
  %v418 = vpop.f32.mrb[0].mxu0
  %419 = vdwg.mxu0
  %420 = vmatprep.subr.bf16.mxu0 0
  %421 = vmatpush1.bf16.msra.mxu0 %v352
  %422 = vmatprep.subr.bf16.mxu0 0
  %423 = vmatpush1.bf16.msra.mxu0 %v355
  %424 = vmatprep.subr.bf16.mxu0 0
  %425 = vmatpush1.bf16.msra.mxu0 %v377
  %426 = vmatprep.subr.bf16.mxu0 0
  %427 = vmatpush1.bf16.msra.mxu0 0
  %428 = vmatprep.subr.bf16.mxu0 0
  %429 = vmatpush1.bf16.msra.mxu0 0
  %430 = vmatprep.subr.bf16.mxu0 0
  %431 = vmatpush1.bf16.msra.mxu0 0
  %432 = vmatprep.subr.bf16.mxu0 0
  %433 = vmatpush1.bf16.msra.mxu0 0
  %434 = vmatprep.subr.bf16.mxu0 0
  %435 = vmatpush1.bf16.msra.mxu0 0
  %436 = vmatprep.subr.bf16.mxu0 0
  %437 = vmatpush1.bf16.msra.mxu0 0
  %438 = vmatprep.subr.bf16.mxu0 0
  %439 = vmatpush1.bf16.msra.mxu0 0
  %440 = vmatprep.subr.bf16.mxu0 0
  %441 = vmatpush1.bf16.msra.mxu0 0
  %442 = vmatprep.subr.bf16.mxu0 0
  %443 = vmatpush1.bf16.msra.mxu0 0
  %444 = vmatprep.subr.bf16.mxu0 0
  %445 = vmatpush1.bf16.msra.mxu0 0
  %446 = vmatprep.subr.bf16.mxu0 0
  %447 = vmatpush1.bf16.msra.mxu0 0
  %448 = vmatprep.subr.bf16.mxu0 0
  %449 = vmatpush1.bf16.msra.mxu0 0
  %450 = vmatprep.subr.bf16.mxu0 0
  %451 = vmatpush1.bf16.msra.mxu0 0
  %452 = vmatprep.mubr.bf16.mxu0 0
  %453 = vmatmul.mubr.bf16.gmra.mrb[0].mxu0 %v367
  %v454 = vpop.f32.mrb[0].mxu0
  %v455 = vadd.f32 0.0, %v454
  %v456 = vpop.f32.mrb[0].mxu0
  %v457 = vpop.f32.mrb[0].mxu0
  %v458 = vpop.f32.mrb[0].mxu0
  %459 = vdwg.mxu0
  %461 = vset.pattern.permute.xlu0 0
  %462 = vperm.xlu0 %461, %v39
  %v463 = vpop.permute.xlu0 %462
  %v465 = vmul.f32 %v414, %v463
  %v466 = vmul.f32 %v416, %v463
  %v467 = vmul.f32 %v455, %v463
  %469 = vset.pattern.permute.xlu0 0
  %470 = vperm.xlu0 %469, %v42
  %v471 = vpop.permute.xlu0 %470
  %v473 = vadd.f32 %v465, %v471
  %v474 = vadd.f32 %v466, %v471
  %v475 = vadd.f32 %v467, %v471
  %v476 = vmax.f32 %v473, 0.0
  %v477 = vmax.f32 %v474, 0.0
  %v478 = vmax.f32 %v475, 0.0
  %479 = vst [vmem:[#allocation3] sm:$0xff] %v476
  %480 = vst [vmem:[#allocation3 + $0x8] sm:$0xff] %v477
  %481 = vst [vmem:[#allocation3 + $0x10] sm:$0xff] %v478
  %v482 = vld [vmem:[#allocation3] sm:$0xff]
  %v483 = vld [vmem:[#allocation3 + $0x8] sm:$0xff]
  %v484 = vld [vmem:[#allocation3 + $0x10] sm:$0xff]
  %v485 = vld [vmem:[#allocation3 + $0x18] sm:$0xff]
  %490 = vrot.lane.b32.xlu0 %v482, 127
  %v491 = vpop.permute.xlu0 %490
  %492 = vrot.lane.b32.xlu0 %v483, 127
  %v493 = vpop.permute.xlu0 %492
  %494 = vrot.lane.b32.xlu0 %v484, 127
  %v495 = vpop.permute.xlu0 %494
  %496 = vrot.lane.b32.xlu0 %v485, 127
  %v497 = vpop.permute.xlu0 %496
  %vm498 = vcmask 1039360
  %v499 = vsel %vm498, %v491, %v493
  %v500 = vsel %vm498, %v493, %v495
  %v501 = vsel %vm498, %v495, %v497
  %v505 = vmax.f32 %v476, %v499
  %v506 = vmax.f32 %v477, %v500
  %v507 = vmax.f32 %v478, %v501
  %v509 = vmax.f32 %v482, %v499
  %v510 = vmax.f32 %v483, %v500
  %v511 = vmax.f32 %v484, %v501
  %v512 = vmax.f32 %v485, %v497
  %517 = vrot.lane.b32.xlu0 %v509, 110
  %v518 = vpop.permute.xlu0 %517
  %519 = vrot.lane.b32.xlu0 %v510, 110
  %v520 = vpop.permute.xlu0 %519
  %521 = vrot.lane.b32.xlu0 %v511, 110
  %v522 = vpop.permute.xlu0 %521
  %523 = vrot.lane.b32.xlu0 %v512, 110
  %v524 = vpop.permute.xlu0 %523
  %vm525 = vcmask 900096
  %v526 = vsel %vm525, %v518, %v520
  %v527 = vsel %vm525, %v520, %v522
  %v528 = vsel %vm525, %v522, %v524
  %v532 = vmax.f32 %v505, %v526
  %v533 = vmax.f32 %v506, %v527
  %v534 = vmax.f32 %v507, %v528
  %v535 = vld [vmem:[%s6] sm:$0xff]
  %v536 = vld [vmem:[%s6 + $0x8] sm:$0xff]
  %v537 = vld [vmem:[%s6 + $0x10] sm:$0xff]
  %v538 = vld [vmem:[%s6 + $0x18] sm:$0xff]
  %v539 = vld [vmem:[%s6 + $0x20] sm:$0xff]
  %v540 = vld [vmem:[%s6 + $0x28] sm:$0xff]
  %v541 = vld [vmem:[%s6 + $0x30] sm:$0xff]
  %v542 = vld [vmem:[%s6 + $0x38] sm:$0xff]
  %v543 = vld [vmem:[%s6 + $0x40] sm:$0xff]
  %v544 = vld [vmem:[%s6 + $0x48] sm:$0xff]
  %v545 = vld [vmem:[%s6 + $0x50] sm:$0xff]
  %v546 = vld [vmem:[%s6 + $0x58] sm:$0xff]
  %v547 = vld [vmem:[%s6 + $0x60] sm:$0xff]
  %v548 = vld [vmem:[%s6 + $0x68] sm:$0xff]
  %v549 = vld [vmem:[%s6 + $0x70] sm:$0xff]
  %v550 = vld [vmem:[%s6 + $0x78] sm:$0xff]
  %v551 = vld [vmem:[%s6 + $0x80] sm:$0xff]
  %v552 = vld [vmem:[%s6 + $0x88] sm:$0xff]
  %v553 = vld [vmem:[%s6 + $0x90] sm:$0xff]
  %v554 = vld [vmem:[%s6 + $0x98] sm:$0xff]
  %v555 = vld [vmem:[%s6 + $0xa0] sm:$0xff]
  %v556 = vld [vmem:[%s6 + $0xa8] sm:$0xff]
  %v557 = vld [vmem:[%s6 + $0xb0] sm:$0xff]
  %v558 = vld [vmem:[%s6 + $0xb8] sm:$0xff]
  %v559 = vld [vmem:[%s6 + $0xc0] sm:$0xff]
  %v560 = vld [vmem:[%s6 + $0xc8] sm:$0xff]
  %v561 = vld [vmem:[%s6 + $0xd0] sm:$0xff]
  %v562 = vld [vmem:[%s6 + $0xd8] sm:$0xff]
  %v563 = vld [vmem:[%s6 + $0xe0] sm:$0xff]
  %v564 = vld [vmem:[%s6 + $0xe8] sm:$0xff]
  %v565 = vld [vmem:[%s6 + $0xf0] sm:$0xff]
  %v566 = vld [vmem:[%s6 + $0xf8] sm:$0xff]
  %v567 = vld [vmem:[%s6 + $0x100] sm:$0xff]
  %v568 = vld [vmem:[%s6 + $0x108] sm:$0xff]
  %v569 = vld [vmem:[%s6 + $0x110] sm:$0xff]
  %v570 = vld [vmem:[%s6 + $0x118] sm:$0xff]
  %v571 = vld [vmem:[%s6 + $0x120] sm:$0xff]
  %v572 = vld [vmem:[%s6 + $0x128] sm:$0xff]
  %v573 = vld [vmem:[%s6 + $0x130] sm:$0xff]
  %v574 = vld [vmem:[%s6 + $0x138] sm:$0xff]
  %v575 = vld [vmem:[%s6 + $0x140] sm:$0xff]
  %v576 = vld [vmem:[%s6 + $0x148] sm:$0xff]
  %v577 = vld [vmem:[%s6 + $0x150] sm:$0xff]
  %v578 = vld [vmem:[%s6 + $0x158] sm:$0xff]
  %v579 = vld [vmem:[%s6 + $0x160] sm:$0xff]
  %v580 = vld [vmem:[%s6 + $0x168] sm:$0xff]
  %v581 = vld [vmem:[%s6 + $0x170] sm:$0xff]
  %v582 = vld [vmem:[%s6 + $0x178] sm:$0xff]
  %583 = vmatprep.subr.mxu0 0.0
  %584 = vmatpush1.msra.mxu0 %v535
  %585 = vmatprep.subr.mxu0 0.0
  %586 = vmatpush1.msra.mxu0 %v536
  %587 = vmatprep.subr.mxu0 0.0
  %588 = vmatpush1.msra.mxu0 %v537
  %589 = vmatprep.subr.mxu0 0.0
  %590 = vmatpush1.msra.mxu0 %v538
  %591 = vmatprep.subr.mxu0 0.0
  %592 = vmatpush1.msra.mxu0 %v539
  %593 = vmatprep.subr.mxu0 0.0
  %594 = vmatpush1.msra.mxu0 %v540
  %595 = vmatprep.subr.mxu0 0.0
  %596 = vmatpush1.msra.mxu0 %v541
  %597 = vmatprep.subr.mxu0 0.0
  %598 = vmatpush1.msra.mxu0 %v542
  %599 = vmatprep.subr.mxu0 0.0
  %600 = vmatpush1.msra.mxu0 %v543
  %601 = vmatprep.subr.mxu0 0.0
  %602 = vmatpush1.msra.mxu0 %v544
  %603 = vmatprep.subr.mxu0 0.0
  %604 = vmatpush1.msra.mxu0 %v545
  %605 = vmatprep.subr.mxu0 0.0
  %606 = vmatpush1.msra.mxu0 %v546
  %607 = vmatprep.subr.mxu0 0.0
  %608 = vmatpush1.msra.mxu0 %v547
  %609 = vmatprep.subr.mxu0 0.0
  %610 = vmatpush1.msra.mxu0 %v548
  %611 = vmatprep.subr.mxu0 0.0
  %612 = vmatpush1.msra.mxu0 %v549
  %613 = vmatprep.subr.mxu0 0.0
  %614 = vmatpush1.msra.mxu0 %v550
  %615 = vmatprep.subr.mxu0 0.0
  %616 = vmatpush1.msra.mxu0 %v551
  %617 = vmatprep.subr.mxu0 0.0
  %618 = vmatpush1.msra.mxu0 %v552
  %619 = vmatprep.subr.mxu0 0.0
  %620 = vmatpush1.msra.mxu0 %v553
  %621 = vmatprep.subr.mxu0 0.0
  %622 = vmatpush1.msra.mxu0 %v554
  %623 = vmatprep.subr.mxu0 0.0
  %624 = vmatpush1.msra.mxu0 %v555
  %625 = vmatprep.subr.mxu0 0.0
  %626 = vmatpush1.msra.mxu0 %v556
  %627 = vmatprep.subr.mxu0 0.0
  %628 = vmatpush1.msra.mxu0 %v557
  %629 = vmatprep.subr.mxu0 0.0
  %630 = vmatpush1.msra.mxu0 %v558
  %631 = vmatprep.subr.mxu0 0.0
  %632 = vmatpush1.msra.mxu0 %v559
  %633 = vmatprep.subr.mxu0 0.0
  %634 = vmatpush1.msra.mxu0 %v560
  %635 = vmatprep.subr.mxu0 0.0
  %636 = vmatpush1.msra.mxu0 %v561
  %637 = vmatprep.subr.mxu0 0.0
  %638 = vmatpush1.msra.mxu0 %v562
  %639 = vmatprep.subr.mxu0 0.0
  %640 = vmatpush1.msra.mxu0 %v563
  %641 = vmatprep.subr.mxu0 0.0
  %642 = vmatpush1.msra.mxu0 %v564
  %643 = vmatprep.subr.mxu0 0.0
  %644 = vmatpush1.msra.mxu0 %v565
  %645 = vmatprep.subr.mxu0 0.0
  %646 = vmatpush1.msra.mxu0 %v566
  %647 = vmatprep.mubr.f32.mxu0 %v533
  %648 = vmatmul.mubr.f32.gmra.mrb[0].mxu0 %v532
  %v649 = vpop.f32.mrb[0].mxu0
  %v650 = vadd.f32 0.0, %v649
  %v651 = vpop.f32.mrb[0].mxu0
  %652 = vdwg.mxu0
  %653 = vmatprep.subr.mxu0 0.0
  %654 = vmatpush1.msra.mxu0 %v567
  %655 = vmatprep.subr.mxu0 0.0
  %656 = vmatpush1.msra.mxu0 %v568
  %657 = vmatprep.subr.mxu0 0.0
  %658 = vmatpush1.msra.mxu0 %v569
  %659 = vmatprep.subr.mxu0 0.0
  %660 = vmatpush1.msra.mxu0 %v570
  %661 = vmatprep.subr.mxu0 0.0
  %662 = vmatpush1.msra.mxu0 %v571
  %663 = vmatprep.subr.mxu0 0.0
  %664 = vmatpush1.msra.mxu0 %v572
  %665 = vmatprep.subr.mxu0 0.0
  %666 = vmatpush1.msra.mxu0 %v573
  %667 = vmatprep.subr.mxu0 0.0
  %668 = vmatpush1.msra.mxu0 %v574
  %669 = vmatprep.subr.mxu0 0.0
  %670 = vmatpush1.msra.mxu0 %v575
  %671 = vmatprep.subr.mxu0 0.0
  %672 = vmatpush1.msra.mxu0 %v576
  %673 = vmatprep.subr.mxu0 0.0
  %674 = vmatpush1.msra.mxu0 %v577
  %675 = vmatprep.subr.mxu0 0.0
  %676 = vmatpush1.msra.mxu0 %v578
  %677 = vmatprep.subr.mxu0 0.0
  %678 = vmatpush1.msra.mxu0 %v579
  %679 = vmatprep.subr.mxu0 0.0
  %680 = vmatpush1.msra.mxu0 %v580
  %681 = vmatprep.subr.mxu0 0.0
  %682 = vmatpush1.msra.mxu0 %v581
  %683 = vmatprep.subr.mxu0 0.0
  %684 = vmatpush1.msra.mxu0 %v582
  %685 = vmatprep.subr.mxu0 0.0
  %686 = vmatpush1.msra.mxu0 0.0
  %687 = vmatprep.subr.mxu0 0.0
  %688 = vmatpush1.msra.mxu0 0.0
  %689 = vmatprep.subr.mxu0 0.0
  %690 = vmatpush1.msra.mxu0 0.0
  %691 = vmatprep.subr.mxu0 0.0
  %692 = vmatpush1.msra.mxu0 0.0
  %693 = vmatprep.subr.mxu0 0.0
  %694 = vmatpush1.msra.mxu0 0.0
  %695 = vmatprep.subr.mxu0 0.0
  %696 = vmatpush1.msra.mxu0 0.0
  %697 = vmatprep.subr.mxu0 0.0
  %698 = vmatpush1.msra.mxu0 0.0
  %699 = vmatprep.subr.mxu0 0.0
  %700 = vmatpush1.msra.mxu0 0.0
  %701 = vmatprep.subr.mxu0 0.0
  %702 = vmatpush1.msra.mxu0 0.0
  %703 = vmatprep.subr.mxu0 0.0
  %704 = vmatpush1.msra.mxu0 0.0
  %705 = vmatprep.subr.mxu0 0.0
  %706 = vmatpush1.msra.mxu0 0.0
  %707 = vmatprep.subr.mxu0 0.0
  %708 = vmatpush1.msra.mxu0 0.0
  %709 = vmatprep.subr.mxu0 0.0
  %710 = vmatpush1.msra.mxu0 0.0
  %711 = vmatprep.subr.mxu0 0.0
  %712 = vmatpush1.msra.mxu0 0.0
  %713 = vmatprep.subr.mxu0 0.0
  %714 = vmatpush1.msra.mxu0 0.0
  %715 = vmatprep.subr.mxu0 0.0
  %716 = vmatpush1.msra.mxu0 0.0
  %717 = vmatprep.mubr.f32.mxu0 0.0
  %718 = vmatmul.mubr.f32.gmra.mrb[0].mxu0 %v534
  %v719 = vpop.f32.mrb[0].mxu0
  %v720 = vadd.f32 %v650, %v719
  %v721 = vpop.f32.mrb[0].mxu0
  %722 = vdwg.mxu0
  %vm723 = vcmask 523264
  %724 = vst.msk [vmem:[%s7] sm:$0xff] %vm723, %v720
  %s725 = scalar_lea.vmem %s0, 8
  %v726 = vld [vmem:[%s725] sm:$0x3f]
  %v728 = vcombine.high %v726, %v726
  %v730 = vunpack.c.l.s4 1983009808
  %v731 = vunpack.c.0.s8 %v730
  %v732 = vlaneseq
  %v733 = vshrl.u32 %v732, 7
  %v734 = vsub.s32 %v731, %v733
  %v735 = vrot.slane %v726, %v734
  %v737 = vunpack.c.l.s4 1983009808
  %v738 = vunpack.c.0.s8 %v737
  %v739 = vlaneseq
  %v740 = vshrl.u32 %v739, 7
  %v741 = vsub.s32 %v738, %v740
  %v742 = vrot.slane %v728, %v741
  %745 = vst [vmem:[#allocation2] sm:$0x33] %v735
  %746 = vst [vmem:[#allocation2 + $0x8] sm:$0x3] %v742
  %v747 = vld [vmem:[%s725] sm:$0xff]
  %v749 = vcombine.low %v747, %v747
  %v751 = vunpack.c.l.s4 1983009808
  %v752 = vunpack.c.0.s8 %v751
  %v753 = vlaneseq
  %v754 = vshrl.u32 %v753, 7
  %v755 = vsub.s32 %v752, %v754
  %v756 = vrot.slane %v749, %v755
  %v758 = vunpack.c.l.s4 1983009808
  %v759 = vunpack.c.0.s8 %v758
  %v760 = vlaneseq
  %v761 = vshrl.u32 %v760, 7
  %v762 = vsub.s32 %v759, %v761
  %v763 = vrot.slane %v747, %v762
  %764 = vrot.lane.b32.xlu0 %v756, 127
  %v765 = vpop.permute.xlu0 %764
  %766 = vrot.lane.b32.xlu0 %v763, 127
  %v767 = vpop.permute.xlu0 %766
  %v768 = vrot.slane %v765, 4
  %v769 = vrot.slane %v767, 4
  %v770 = vsel %vm88, %v768, %v769
  %v771 = vsel %vm90, %v765, %v770
  %v772 = vsel %vm90, %v767, %v769
  %775 = vst [vmem:[#allocation2] sm:$0xcc] %v771
  %776 = vst [vmem:[#allocation2 + $0x8] sm:$0xc] %v772
  %v777 = vld [vmem:[%s725] sm:$0xff]
  %v779 = vcombine.high %v777, %v777
  %v781 = vunpack.c.l.s4 1983009808
  %v782 = vunpack.c.0.s8 %v781
  %v783 = vlaneseq
  %v784 = vshrl.u32 %v783, 7
  %v785 = vsub.s32 %v782, %v784
  %v786 = vrot.slane %v777, %v785
  %v788 = vunpack.c.l.s4 1983009808
  %v789 = vunpack.c.0.s8 %v788
  %v790 = vlaneseq
  %v791 = vshrl.u32 %v790, 7
  %v792 = vsub.s32 %v789, %v791
  %v793 = vrot.slane %v779, %v792
  %794 = vrot.lane.b32.xlu0 %v786, 126
  %v795 = vpop.permute.xlu0 %794
  %796 = vrot.lane.b32.xlu0 %v793, 126
  %v797 = vpop.permute.xlu0 %796
  %v798 = vrot.slane %v795, 4
  %v799 = vrot.slane %v797, 4
  %v800 = vsel %vm88, %v798, %v799
  %v801 = vsel %vm121, %v795, %v800
  %v802 = vsel %vm121, %v797, %v799
  %805 = vst [vmem:[#allocation2 + $0xc] sm:$0x33] %v801
  %806 = vst [vmem:[#allocation2 + $0x14] sm:$0x3] %v802
  %v807 = vld [vmem:[%s725] sm:$0xff]
  %v809 = vcombine.low %v807, %v807
  %v811 = vunpack.c.l.s4 1983009808
  %v812 = vunpack.c.0.s8 %v811
  %v813 = vlaneseq
  %v814 = vshrl.u32 %v813, 7
  %v815 = vsub.s32 %v812, %v814
  %v816 = vrot.slane %v809, %v815
  %v818 = vunpack.c.l.s4 1983009808
  %v819 = vunpack.c.0.s8 %v818
  %v820 = vlaneseq
  %v821 = vshrl.u32 %v820, 7
  %v822 = vsub.s32 %v819, %v821
  %v823 = vrot.slane %v807, %v822
  %824 = vrot.lane.b32.xlu0 %v816, 110
  %v825 = vpop.permute.xlu0 %824
  %826 = vrot.lane.b32.xlu0 %v823, 110
  %v827 = vpop.permute.xlu0 %826
  %v828 = vrot.slane %v825, 4
  %v829 = vrot.slane %v827, 4
  %v830 = vsel %vm88, %v828, %v829
  %v831 = vsel %vm152, %v825, %v830
  %v832 = vsel %vm152, %v827, %v829
  %835 = vst [vmem:[#allocation2 + $0xc] sm:$0xcc] %v831
  %836 = vst [vmem:[#allocation2 + $0x14] sm:$0xc] %v832
  %v837 = vld [vmem:[%s725] sm:$0xff]
  %v839 = vcombine.high %v837, %v837
  %v841 = vunpack.c.l.s4 1983009808
  %v842 = vunpack.c.0.s8 %v841
  %v843 = vlaneseq
  %v844 = vshrl.u32 %v843, 7
  %v845 = vsub.s32 %v842, %v844
  %v846 = vrot.slane %v837, %v845
  %v848 = vunpack.c.l.s4 1983009808
  %v849 = vunpack.c.0.s8 %v848
  %v850 = vlaneseq
  %v851 = vshrl.u32 %v850, 7
  %v852 = vsub.s32 %v849, %v851
  %v853 = vrot.slane %v839, %v852
  %854 = vrot.lane.b32.xlu0 %v846, 109
  %v855 = vpop.permute.xlu0 %854
  %856 = vrot.lane.b32.xlu0 %v853, 109
  %v857 = vpop.permute.xlu0 %856
  %v858 = vrot.slane %v855, 4
  %v859 = vrot.slane %v857, 4
  %v860 = vsel %vm88, %v858, %v859
  %v861 = vsel %vm183, %v855, %v860
  %v862 = vsel %vm183, %v857, %v859
  %865 = vst [vmem:[#allocation2 + $0x18] sm:$0x33] %v861
  %866 = vst [vmem:[#allocation2 + $0x20] sm:$0x3] %v862
  %v867 = vld [vmem:[%s725] sm:$0xff]
  %v869 = vcombine.low %v867, %v867
  %v871 = vunpack.c.l.s4 1983009808
  %v872 = vunpack.c.0.s8 %v871
  %v873 = vlaneseq
  %v874 = vshrl.u32 %v873, 7
  %v875 = vsub.s32 %v872, %v874
  %v876 = vrot.slane %v869, %v875
  %v878 = vunpack.c.l.s4 1983009808
  %v879 = vunpack.c.0.s8 %v878
  %v880 = vlaneseq
  %v881 = vshrl.u32 %v880, 7
  %v882 = vsub.s32 %v879, %v881
  %v883 = vrot.slane %v867, %v882
  %884 = vrot.lane.b32.xlu0 %v876, 108
  %v885 = vpop.permute.xlu0 %884
  %886 = vrot.lane.b32.xlu0 %v883, 108
  %v887 = vpop.permute.xlu0 %886
  %v888 = vrot.slane %v885, 4
  %v889 = vrot.slane %v887, 4
  %v890 = vsel %vm88, %v888, %v889
  %v891 = vsel %vm214, %v885, %v890
  %v892 = vsel %vm214, %v887, %v889
  %895 = vst [vmem:[#allocation2 + $0x18] sm:$0xcc] %v891
  %896 = vst [vmem:[#allocation2 + $0x20] sm:$0xc] %v892
  %v897 = vld [vmem:[%s725] sm:$0xff]
  %v899 = vcombine.high %v897, %v897
  %v901 = vunpack.c.l.s4 1983009808
  %v902 = vunpack.c.0.s8 %v901
  %v903 = vlaneseq
  %v904 = vshrl.u32 %v903, 7
  %v905 = vsub.s32 %v902, %v904
  %v906 = vrot.slane %v897, %v905
  %v908 = vunpack.c.l.s4 1983009808
  %v909 = vunpack.c.0.s8 %v908
  %v910 = vlaneseq
  %v911 = vshrl.u32 %v910, 7
  %v912 = vsub.s32 %v909, %v911
  %v913 = vrot.slane %v899, %v912
  %914 = vrot.lane.b32.xlu0 %v906, 92
  %v915 = vpop.permute.xlu0 %914
  %916 = vrot.lane.b32.xlu0 %v913, 92
  %v917 = vpop.permute.xlu0 %916
  %v918 = vrot.slane %v915, 4
  %v919 = vrot.slane %v917, 4
  %v920 = vsel %vm88, %v918, %v919
  %v921 = vsel %vm245, %v915, %v920
  %v922 = vsel %vm245, %v917, %v919
  %925 = vst [vmem:[#allocation2 + $0x24] sm:$0x33] %v921
  %926 = vst [vmem:[#allocation2 + $0x2c] sm:$0x3] %v922
  %v927 = vld [vmem:[%s725] sm:$0xff]
  %v929 = vcombine.low %v927, %v927
  %v931 = vunpack.c.l.s4 1983009808
  %v932 = vunpack.c.0.s8 %v931
  %v933 = vlaneseq
  %v934 = vshrl.u32 %v933, 7
  %v935 = vsub.s32 %v932, %v934
  %v936 = vrot.slane %v929, %v935
  %v938 = vunpack.c.l.s4 1983009808
  %v939 = vunpack.c.0.s8 %v938
  %v940 = vlaneseq
  %v941 = vshrl.u32 %v940, 7
  %v942 = vsub.s32 %v939, %v941
  %v943 = vrot.slane %v927, %v942
  %944 = vrot.lane.b32.xlu0 %v936, 91
  %v945 = vpop.permute.xlu0 %944
  %946 = vrot.lane.b32.xlu0 %v943, 91
  %v947 = vpop.permute.xlu0 %946
  %v948 = vrot.slane %v945, 4
  %v949 = vrot.slane %v947, 4
  %v950 = vsel %vm88, %v948, %v949
  %v951 = vsel %vm276, %v945, %v950
  %v952 = vsel %vm276, %v947, %v949
  %955 = vst [vmem:[#allocation2 + $0x24] sm:$0xcc] %v951
  %956 = vst [vmem:[#allocation2 + $0x2c] sm:$0xc] %v952
  %v957 = vld [vmem:[%s725] sm:$0xff]
  %v959 = vcombine.high %v957, %v957
  %v961 = vunpack.c.l.s4 1983009808
  %v962 = vunpack.c.0.s8 %v961
  %v963 = vlaneseq
  %v964 = vshrl.u32 %v963, 7
  %v965 = vsub.s32 %v962, %v964
  %v966 = vrot.slane %v957, %v965
  %v968 = vunpack.c.l.s4 1983009808
  %v969 = vunpack.c.0.s8 %v968
  %v970 = vlaneseq
  %v971 = vshrl.u32 %v970, 7
  %v972 = vsub.s32 %v969, %v971
  %v973 = vrot.slane %v959, %v972
  %974 = vrot.lane.b32.xlu0 %v966, 90
  %v975 = vpop.permute.xlu0 %974
  %976 = vrot.lane.b32.xlu0 %v973, 90
  %v977 = vpop.permute.xlu0 %976
  %v978 = vrot.slane %v975, 4
  %v979 = vrot.slane %v977, 4
  %v980 = vsel %vm88, %v978, %v979
  %v981 = vsel %vm307, %v975, %v980
  %v982 = vsel %vm307, %v977, %v979
  %985 = vst [vmem:[#allocation2 + $0x30] sm:$0x33] %v981
  %986 = vst [vmem:[#allocation2 + $0x38] sm:$0x3] %v982
  %v987 = vld [vmem:[%s1] sm:$0xf]
  %v988 = vld [vmem:[#allocation2] sm:$0xff]
  %v989 = vld [vmem:[#allocation2 + $0x8] sm:$0xf]
  %v990 = vld [vmem:[#allocation2 + $0xc] sm:$0xff]
  %v991 = vld [vmem:[#allocation2 + $0x14] sm:$0xf]
  %v992 = vld [vmem:[#allocation2 + $0x18] sm:$0xff]
  %v993 = vld [vmem:[#allocation2 + $0x20] sm:$0xf]
  %v994 = vld [vmem:[#allocation2 + $0x24] sm:$0xff]
  %v995 = vld [vmem:[#allocation2 + $0x2c] sm:$0xf]
  %v996 = vld [vmem:[#allocation2 + $0x30] sm:$0x33]
  %v997 = vld [vmem:[#allocation2 + $0x38] sm:$0x3]
  %v1008 = vunpack.c.l.b16 %v988
  %v1009 = vunpack.c.h.b16 %v988
  %v1010 = vunpack.c.l.b16 %v989
  %v1011 = vunpack.c.l.b16 %v990
  %v1012 = vunpack.c.h.b16 %v990
  %v1013 = vunpack.c.l.b16 %v991
  %v1014 = vunpack.c.l.b16 %v992
  %v1015 = vunpack.c.h.b16 %v992
  %v1016 = vunpack.c.l.b16 %v993
  %v1017 = vunpack.c.l.b16 %v994
  %v1018 = vunpack.c.h.b16 %v994
  %v1019 = vunpack.c.l.b16 %v995
  %v1020 = vunpack.c.l.b16 %v996
  %v1021 = vunpack.c.h.b16 %v996
  %v1022 = vunpack.c.l.b16 %v997
  %v1023 = vpack.c.b16 %v1011, %v1008
  %v1024 = vpack.c.b16 %v1012, %v1009
  %v1025 = vpack.c.b16 %v1013, %v1010
  %v1026 = vpack.c.b16 %v1017, %v1014
  %v1027 = vpack.c.b16 %v1018, %v1015
  %v1028 = vpack.c.b16 %v1019, %v1016
  %v1029 = vpack.c.b16 %v1020, %v1020
  %v1030 = vpack.c.b16 %v1021, %v1021
  %v1031 = vpack.c.b16 %v1022, %v1022
  %v1039 = vsel %vm365, %v987, 0
  %v1042 = vsel %vm369, %v1029, 0
  %v1045 = vsel %vm369, %v1030, 0
  %v1048 = vsel %vm369, %v1031, 0
  %1050 = vmatprep.subr.bf16.mxu0 %v1024
  %1051 = vmatpush1.bf16.msra.mxu0 %v1023
  %1052 = vmatprep.subr.bf16.mxu0 %v1027
  %1053 = vmatpush1.bf16.msra.mxu0 %v1026
  %1054 = vmatprep.subr.bf16.mxu0 %v1045
  %1055 = vmatpush1.bf16.msra.mxu0 %v1042
  %1056 = vmatprep.subr.bf16.mxu0 0
  %1057 = vmatpush1.bf16.msra.mxu0 0
  %1058 = vmatprep.subr.bf16.mxu0 0
  %1059 = vmatpush1.bf16.msra.mxu0 0
  %1060 = vmatprep.subr.bf16.mxu0 0
  %1061 = vmatpush1.bf16.msra.mxu0 0
  %1062 = vmatprep.subr.bf16.mxu0 0
  %1063 = vmatpush1.bf16.msra.mxu0 0
  %1064 = vmatprep.subr.bf16.mxu0 0
  %1065 = vmatpush1.bf16.msra.mxu0 0
  %1066 = vmatprep.subr.bf16.mxu0 0
  %1067 = vmatpush1.bf16.msra.mxu0 0
  %1068 = vmatprep.subr.bf16.mxu0 0
  %1069 = vmatpush1.bf16.msra.mxu0 0
  %1070 = vmatprep.subr.bf16.mxu0 0
  %1071 = vmatpush1.bf16.msra.mxu0 0
  %1072 = vmatprep.subr.bf16.mxu0 0
  %1073 = vmatpush1.bf16.msra.mxu0 0
  %1074 = vmatprep.subr.bf16.mxu0 0
  %1075 = vmatpush1.bf16.msra.mxu0 0
  %1076 = vmatprep.subr.bf16.mxu0 0
  %1077 = vmatpush1.bf16.msra.mxu0 0
  %1078 = vmatprep.subr.bf16.mxu0 0
  %1079 = vmatpush1.bf16.msra.mxu0 0
  %1080 = vmatprep.subr.bf16.mxu0 0
  %1081 = vmatpush1.bf16.msra.mxu0 0
  %1082 = vmatprep.mubr.bf16.mxu0 0
  %1083 = vmatmul.mubr.bf16.gmra.mrb[0].mxu0 %v1039
  %v1084 = vpop.f32.mrb[0].mxu0
  %v1085 = vadd.f32 0.0, %v1084
  %v1086 = vpop.f32.mrb[0].mxu0
  %v1087 = vadd.f32 0.0, %v1086
  %v1088 = vpop.f32.mrb[0].mxu0
  %v1089 = vpop.f32.mrb[0].mxu0
  %1090 = vdwg.mxu0
  %1091 = vmatprep.subr.bf16.mxu0 0
  %1092 = vmatpush1.bf16.msra.mxu0 %v1025
  %1093 = vmatprep.subr.bf16.mxu0 0
  %1094 = vmatpush1.bf16.msra.mxu0 %v1028
  %1095 = vmatprep.subr.bf16.mxu0 0
  %1096 = vmatpush1.bf16.msra.mxu0 %v1048
  %1097 = vmatprep.subr.bf16.mxu0 0
  %1098 = vmatpush1.bf16.msra.mxu0 0
  %1099 = vmatprep.subr.bf16.mxu0 0
  %1100 = vmatpush1.bf16.msra.mxu0 0
  %1101 = vmatprep.subr.bf16.mxu0 0
  %1102 = vmatpush1.bf16.msra.mxu0 0
  %1103 = vmatprep.subr.bf16.mxu0 0
  %1104 = vmatpush1.bf16.msra.mxu0 0
  %1105 = vmatprep.subr.bf16.mxu0 0
  %1106 = vmatpush1.bf16.msra.mxu0 0
  %1107 = vmatprep.subr.bf16.mxu0 0
  %1108 = vmatpush1.bf16.msra.mxu0 0
  %1109 = vmatprep.subr.bf16.mxu0 0
  %1110 = vmatpush1.bf16.msra.mxu0 0
  %1111 = vmatprep.subr.bf16.mxu0 0
  %1112 = vmatpush1.bf16.msra.mxu0 0
  %1113 = vmatprep.subr.bf16.mxu0 0
  %1114 = vmatpush1.bf16.msra.mxu0 0
  %1115 = vmatprep.subr.bf16.mxu0 0
  %1116 = vmatpush1.bf16.msra.mxu0 0
  %1117 = vmatprep.subr.bf16.mxu0 0
  %1118 = vmatpush1.bf16.msra.mxu0 0
  %1119 = vmatprep.subr.bf16.mxu0 0
  %1120 = vmatpush1.bf16.msra.mxu0 0
  %1121 = vmatprep.subr.bf16.mxu0 0
  %1122 = vmatpush1.bf16.msra.mxu0 0
  %1123 = vmatprep.mubr.bf16.mxu0 0
  %1124 = vmatmul.mubr.bf16.gmra.mrb[0].mxu0 %v1039
  %v1125 = vpop.f32.mrb[0].mxu0
  %v1126 = vadd.f32 0.0, %v1125
  %v1127 = vpop.f32.mrb[0].mxu0
  %v1128 = vpop.f32.mrb[0].mxu0
  %v1129 = vpop.f32.mrb[0].mxu0
  %1130 = vdwg.mxu0
  %v1131 = vmul.f32 %v1085, %v463
  %v1132 = vmul.f32 %v1087, %v463
  %v1133 = vmul.f32 %v1126, %v463
  %v1134 = vadd.f32 %v1131, %v471
  %v1135 = vadd.f32 %v1132, %v471
  %v1136 = vadd.f32 %v1133, %v471
  %v1137 = vmax.f32 %v1134, 0.0
  %v1138 = vmax.f32 %v1135, 0.0
  %v1139 = vmax.f32 %v1136, 0.0
  %1140 = vst [vmem:[#allocation3] sm:$0xff] %v1137
  %1141 = vst [vmem:[#allocation3 + $0x8] sm:$0xff] %v1138
  %1142 = vst [vmem:[#allocation3 + $0x10] sm:$0xff] %v1139
  %v1143 = vld [vmem:[#allocation3] sm:$0xff]
  %v1144 = vld [vmem:[#allocation3 + $0x8] sm:$0xff]
  %v1145 = vld [vmem:[#allocation3 + $0x10] sm:$0xff]
  %v1146 = vld [vmem:[#allocation3 + $0x18] sm:$0xff]
  %1151 = vrot.lane.b32.xlu0 %v1143, 127
  %v1152 = vpop.permute.xlu0 %1151
  %1153 = vrot.lane.b32.xlu0 %v1144, 127
  %v1154 = vpop.permute.xlu0 %1153
  %1155 = vrot.lane.b32.xlu0 %v1145, 127
  %v1156 = vpop.permute.xlu0 %1155
  %1157 = vrot.lane.b32.xlu0 %v1146, 127
  %v1158 = vpop.permute.xlu0 %1157
  %v1159 = vsel %vm498, %v1152, %v1154
  %v1160 = vsel %vm498, %v1154, %v1156
  %v1161 = vsel %vm498, %v1156, %v1158
  %v1165 = vmax.f32 %v1137, %v1159
  %v1166 = vmax.f32 %v1138, %v1160
  %v1167 = vmax.f32 %v1139, %v1161
  %v1169 = vmax.f32 %v1143, %v1159
  %v1170 = vmax.f32 %v1144, %v1160
  %v1171 = vmax.f32 %v1145, %v1161
  %v1172 = vmax.f32 %v1146, %v1158
  %1177 = vrot.lane.b32.xlu0 %v1169, 110
  %v1178 = vpop.permute.xlu0 %1177
  %1179 = vrot.lane.b32.xlu0 %v1170, 110
  %v1180 = vpop.permute.xlu0 %1179
  %1181 = vrot.lane.b32.xlu0 %v1171, 110
  %v1182 = vpop.permute.xlu0 %1181
  %1183 = vrot.lane.b32.xlu0 %v1172, 110
  %v1184 = vpop.permute.xlu0 %1183
  %v1185 = vsel %vm525, %v1178, %v1180
  %v1186 = vsel %vm525, %v1180, %v1182
  %v1187 = vsel %vm525, %v1182, %v1184
  %v1191 = vmax.f32 %v1165, %v1185
  %v1192 = vmax.f32 %v1166, %v1186
  %v1193 = vmax.f32 %v1167, %v1187
  %v1194 = vld [vmem:[%s6] sm:$0xff]
  %v1195 = vld [vmem:[%s6 + $0x8] sm:$0xff]
  %v1196 = vld [vmem:[%s6 + $0x10] sm:$0xff]
  %v1197 = vld [vmem:[%s6 + $0x18] sm:$0xff]
  %v1198 = vld [vmem:[%s6 + $0x20] sm:$0xff]
  %v1199 = vld [vmem:[%s6 + $0x28] sm:$0xff]
  %v1200 = vld [vmem:[%s6 + $0x30] sm:$0xff]
  %v1201 = vld [vmem:[%s6 + $0x38] sm:$0xff]
  %v1202 = vld [vmem:[%s6 + $0x40] sm:$0xff]
  %v1203 = vld [vmem:[%s6 + $0x48] sm:$0xff]
  %v1204 = vld [vmem:[%s6 + $0x50] sm:$0xff]
  %v1205 = vld [vmem:[%s6 + $0x58] sm:$0xff]
  %v1206 = vld [vmem:[%s6 + $0x60] sm:$0xff]
  %v1207 = vld [vmem:[%s6 + $0x68] sm:$0xff]
  %v1208 = vld [vmem:[%s6 + $0x70] sm:$0xff]
  %v1209 = vld [vmem:[%s6 + $0x78] sm:$0xff]
  %v1210 = vld [vmem:[%s6 + $0x80] sm:$0xff]
  %v1211 = vld [vmem:[%s6 + $0x88] sm:$0xff]
  %v1212 = vld [vmem:[%s6 + $0x90] sm:$0xff]
  %v1213 = vld [vmem:[%s6 + $0x98] sm:$0xff]
  %v1214 = vld [vmem:[%s6 + $0xa0] sm:$0xff]
  %v1215 = vld [vmem:[%s6 + $0xa8] sm:$0xff]
  %v1216 = vld [vmem:[%s6 + $0xb0] sm:$0xff]
  %v1217 = vld [vmem:[%s6 + $0xb8] sm:$0xff]
  %v1218 = vld [vmem:[%s6 + $0xc0] sm:$0xff]
  %v1219 = vld [vmem:[%s6 + $0xc8] sm:$0xff]
  %v1220 = vld [vmem:[%s6 + $0xd0] sm:$0xff]
  %v1221 = vld [vmem:[%s6 + $0xd8] sm:$0xff]
  %v1222 = vld [vmem:[%s6 + $0xe0] sm:$0xff]
  %v1223 = vld [vmem:[%s6 + $0xe8] sm:$0xff]
  %v1224 = vld [vmem:[%s6 + $0xf0] sm:$0xff]
  %v1225 = vld [vmem:[%s6 + $0xf8] sm:$0xff]
  %v1226 = vld [vmem:[%s6 + $0x100] sm:$0xff]
  %v1227 = vld [vmem:[%s6 + $0x108] sm:$0xff]
  %v1228 = vld [vmem:[%s6 + $0x110] sm:$0xff]
  %v1229 = vld [vmem:[%s6 + $0x118] sm:$0xff]
  %v1230 = vld [vmem:[%s6 + $0x120] sm:$0xff]
  %v1231 = vld [vmem:[%s6 + $0x128] sm:$0xff]
  %v1232 = vld [vmem:[%s6 + $0x130] sm:$0xff]
  %v1233 = vld [vmem:[%s6 + $0x138] sm:$0xff]
  %v1234 = vld [vmem:[%s6 + $0x140] sm:$0xff]
  %v1235 = vld [vmem:[%s6 + $0x148] sm:$0xff]
  %v1236 = vld [vmem:[%s6 + $0x150] sm:$0xff]
  %v1237 = vld [vmem:[%s6 + $0x158] sm:$0xff]
  %v1238 = vld [vmem:[%s6 + $0x160] sm:$0xff]
  %v1239 = vld [vmem:[%s6 + $0x168] sm:$0xff]
  %v1240 = vld [vmem:[%s6 + $0x170] sm:$0xff]
  %v1241 = vld [vmem:[%s6 + $0x178] sm:$0xff]
  %1242 = vmatprep.subr.mxu0 0.0
  %1243 = vmatpush1.msra.mxu0 %v1194
  %1244 = vmatprep.subr.mxu0 0.0
  %1245 = vmatpush1.msra.mxu0 %v1195
  %1246 = vmatprep.subr.mxu0 0.0
  %1247 = vmatpush1.msra.mxu0 %v1196
  %1248 = vmatprep.subr.mxu0 0.0
  %1249 = vmatpush1.msra.mxu0 %v1197
  %1250 = vmatprep.subr.mxu0 0.0
  %1251 = vmatpush1.msra.mxu0 %v1198
  %1252 = vmatprep.subr.mxu0 0.0
  %1253 = vmatpush1.msra.mxu0 %v1199
  %1254 = vmatprep.subr.mxu0 0.0
  %1255 = vmatpush1.msra.mxu0 %v1200
  %1256 = vmatprep.subr.mxu0 0.0
  %1257 = vmatpush1.msra.mxu0 %v1201
  %1258 = vmatprep.subr.mxu0 0.0
  %1259 = vmatpush1.msra.mxu0 %v1202
  %1260 = vmatprep.subr.mxu0 0.0
  %1261 = vmatpush1.msra.mxu0 %v1203
  %1262 = vmatprep.subr.mxu0 0.0
  %1263 = vmatpush1.msra.mxu0 %v1204
  %1264 = vmatprep.subr.mxu0 0.0
  %1265 = vmatpush1.msra.mxu0 %v1205
  %1266 = vmatprep.subr.mxu0 0.0
  %1267 = vmatpush1.msra.mxu0 %v1206
  %1268 = vmatprep.subr.mxu0 0.0
  %1269 = vmatpush1.msra.mxu0 %v1207
  %1270 = vmatprep.subr.mxu0 0.0
  %1271 = vmatpush1.msra.mxu0 %v1208
  %1272 = vmatprep.subr.mxu0 0.0
  %1273 = vmatpush1.msra.mxu0 %v1209
  %1274 = vmatprep.subr.mxu0 0.0
  %1275 = vmatpush1.msra.mxu0 %v1210
  %1276 = vmatprep.subr.mxu0 0.0
  %1277 = vmatpush1.msra.mxu0 %v1211
  %1278 = vmatprep.subr.mxu0 0.0
  %1279 = vmatpush1.msra.mxu0 %v1212
  %1280 = vmatprep.subr.mxu0 0.0
  %1281 = vmatpush1.msra.mxu0 %v1213
  %1282 = vmatprep.subr.mxu0 0.0
  %1283 = vmatpush1.msra.mxu0 %v1214
  %1284 = vmatprep.subr.mxu0 0.0
  %1285 = vmatpush1.msra.mxu0 %v1215
  %1286 = vmatprep.subr.mxu0 0.0
  %1287 = vmatpush1.msra.mxu0 %v1216
  %1288 = vmatprep.subr.mxu0 0.0
  %1289 = vmatpush1.msra.mxu0 %v1217
  %1290 = vmatprep.subr.mxu0 0.0
  %1291 = vmatpush1.msra.mxu0 %v1218
  %1292 = vmatprep.subr.mxu0 0.0
  %1293 = vmatpush1.msra.mxu0 %v1219
  %1294 = vmatprep.subr.mxu0 0.0
  %1295 = vmatpush1.msra.mxu0 %v1220
  %1296 = vmatprep.subr.mxu0 0.0
  %1297 = vmatpush1.msra.mxu0 %v1221
  %1298 = vmatprep.subr.mxu0 0.0
  %1299 = vmatpush1.msra.mxu0 %v1222
  %1300 = vmatprep.subr.mxu0 0.0
  %1301 = vmatpush1.msra.mxu0 %v1223
  %1302 = vmatprep.subr.mxu0 0.0
  %1303 = vmatpush1.msra.mxu0 %v1224
  %1304 = vmatprep.subr.mxu0 0.0
  %1305 = vmatpush1.msra.mxu0 %v1225
  %1306 = vmatprep.mubr.f32.mxu0 %v1192
  %1307 = vmatmul.mubr.f32.gmra.mrb[0].mxu0 %v1191
  %v1308 = vpop.f32.mrb[0].mxu0
  %v1309 = vadd.f32 0.0, %v1308
  %v1310 = vpop.f32.mrb[0].mxu0
  %1311 = vdwg.mxu0
  %1312 = vmatprep.subr.mxu0 0.0
  %1313 = vmatpush1.msra.mxu0 %v1226
  %1314 = vmatprep.subr.mxu0 0.0
  %1315 = vmatpush1.msra.mxu0 %v1227
  %1316 = vmatprep.subr.mxu0 0.0
  %1317 = vmatpush1.msra.mxu0 %v1228
  %1318 = vmatprep.subr.mxu0 0.0
  %1319 = vmatpush1.msra.mxu0 %v1229
  %1320 = vmatprep.subr.mxu0 0.0
  %1321 = vmatpush1.msra.mxu0 %v1230
  %1322 = vmatprep.subr.mxu0 0.0
  %1323 = vmatpush1.msra.mxu0 %v1231
  %1324 = vmatprep.subr.mxu0 0.0
  %1325 = vmatpush1.msra.mxu0 %v1232
  %1326 = vmatprep.subr.mxu0 0.0
  %1327 = vmatpush1.msra.mxu0 %v1233
  %1328 = vmatprep.subr.mxu0 0.0
  %1329 = vmatpush1.msra.mxu0 %v1234
  %1330 = vmatprep.subr.mxu0 0.0
  %1331 = vmatpush1.msra.mxu0 %v1235
  %1332 = vmatprep.subr.mxu0 0.0
  %1333 = vmatpush1.msra.mxu0 %v1236
  %1334 = vmatprep.subr.mxu0 0.0
  %1335 = vmatpush1.msra.mxu0 %v1237
  %1336 = vmatprep.subr.mxu0 0.0
  %1337 = vmatpush1.msra.mxu0 %v1238
  %1338 = vmatprep.subr.mxu0 0.0
  %1339 = vmatpush1.msra.mxu0 %v1239
  %1340 = vmatprep.subr.mxu0 0.0
  %1341 = vmatpush1.msra.mxu0 %v1240
  %1342 = vmatprep.subr.mxu0 0.0
  %1343 = vmatpush1.msra.mxu0 %v1241
  %1344 = vmatprep.subr.mxu0 0.0
  %1345 = vmatpush1.msra.mxu0 0.0
  %1346 = vmatprep.subr.mxu0 0.0
  %1347 = vmatpush1.msra.mxu0 0.0
  %1348 = vmatprep.subr.mxu0 0.0
  %1349 = vmatpush1.msra.mxu0 0.0
  %1350 = vmatprep.subr.mxu0 0.0
  %1351 = vmatpush1.msra.mxu0 0.0
  %1352 = vmatprep.subr.mxu0 0.0
  %1353 = vmatpush1.msra.mxu0 0.0
  %1354 = vmatprep.subr.mxu0 0.0
  %1355 = vmatpush1.msra.mxu0 0.0
  %1356 = vmatprep.subr.mxu0 0.0
  %1357 = vmatpush1.msra.mxu0 0.0
  %1358 = vmatprep.subr.mxu0 0.0
  %1359 = vmatpush1.msra.mxu0 0.0
  %1360 = vmatprep.subr.mxu0 0.0
  %1361 = vmatpush1.msra.mxu0 0.0
  %1362 = vmatprep.subr.mxu0 0.0
  %1363 = vmatpush1.msra.mxu0 0.0
  %1364 = vmatprep.subr.mxu0 0.0
  %1365 = vmatpush1.msra.mxu0 0.0
  %1366 = vmatprep.subr.mxu0 0.0
  %1367 = vmatpush1.msra.mxu0 0.0
  %1368 = vmatprep.subr.mxu0 0.0
  %1369 = vmatpush1.msra.mxu0 0.0
  %1370 = vmatprep.subr.mxu0 0.0
  %1371 = vmatpush1.msra.mxu0 0.0
  %1372 = vmatprep.subr.mxu0 0.0
  %1373 = vmatpush1.msra.mxu0 0.0
  %1374 = vmatprep.subr.mxu0 0.0
  %1375 = vmatpush1.msra.mxu0 0.0
  %1376 = vmatprep.mubr.f32.mxu0 0.0
  %1377 = vmatmul.mubr.f32.gmra.mrb[0].mxu0 %v1193
  %v1378 = vpop.f32.mrb[0].mxu0
  %v1379 = vadd.f32 %v1309, %v1378
  %v1380 = vpop.f32.mrb[0].mxu0
  %1381 = vdwg.mxu0
  %1383 = vrot.lane.b32.xlu0 %v1379, 64
  %v1384 = vpop.permute.xlu0 %1383
  %vm1386 = vcmask 1048064
  %1387 = vst.msk [vmem:[%s7] sm:$0xff] %vm1386, %v1384
  // Predicated region
  $region30: #{conv_block_forward.3} parent=0 // pred_check
    _
  $region31: #{conv_block_forward.3} parent=0 // pred_check_branch
    %1389 = sbr.rel (0) target = $region33
  $region32: #{conv_block_forward.3} parent=0 // pred_region
    _
  $region33: #{conv_block_forward.3} parent=0 // pred_fallthru
    _
  // Predicated region
  $region34: #{conv_block_forward.3} parent=0 // pred_check
    _
  $region35: #{conv_block_forward.3} parent=0 // pred_check_branch
    %1391 = sbr.rel (0) target = $region37
  $region36: #{conv_block_forward.3} parent=0 // pred_region
    _
  $region37: #{conv_block_forward.3} parent=0 // pred_fallthru
    _

</llo_original>
